<compile_context>
chip_gen: v6e
topology: v6e:2x2x1
jax: 0.10.0
libtpu: 0.0.40
codegen_flags: <defaults>
</compile_context>

<pallas_src>
import math
import functools

import jax
import jax.numpy as jnp
from jax import lax
from jax.experimental import pallas as pl
from jax.experimental.pallas import tpu as pltpu


def _attn_kernel(xq_ref, xkv_ref, wq_ref, wk_ref, wv_ref, wp_ref,
                 bq_ref, bk_ref, bv_ref, bp_ref, o_ref, *, n_head):
    """One (batch, query-tile) grid point; all heads handled in-body."""
    tq, C = xq_ref.shape[1], xq_ref.shape[2]
    T = xkv_ref.shape[1]
    hs = C // n_head

    xq = xq_ref[0].astype(jnp.bfloat16)     # (tq, C)
    xkv = xkv_ref[0].astype(jnp.bfloat16)   # (T,  C)

    # Full-width projections (MXU N = C).  Scale already folded into wq/bq.
    q = jnp.dot(xq, wq_ref[...], preferred_element_type=jnp.float32) + bq_ref[...]
    k = jnp.dot(xkv, wk_ref[...], preferred_element_type=jnp.float32) + bk_ref[...]
    v = jnp.dot(xkv, wv_ref[...], preferred_element_type=jnp.float32) + bv_ref[...]

    qb = q.astype(jnp.bfloat16)
    kb = k.astype(jnp.bfloat16)
    vb = v.astype(jnp.bfloat16)

    # Accumulator starts as the broadcast output bias (hoisted, done once).
    acc = jnp.broadcast_to(bp_ref[...], (tq, C)).astype(jnp.float32)

    # TODO(synk): for very long T, switch to an online-softmax KV loop so the
    # (tq, T) score block and (T, C) K/V stay bounded for v7x's 64 MiB VMEM.
    for h in range(n_head):
        sl = slice(h * hs, (h + 1) * hs)
        qh = qb[:, sl]                       # (tq, hs)
        kh = kb[:, sl]                       # (T,  hs)
        vh = vb[:, sl]                       # (T,  hs)

        # q @ k^T without materializing a transpose of k.
        att = lax.dot_general(qh, kh, (((1,), (1,)), ((), ())),
                              preferred_element_type=jnp.float32)   # (tq, T)

        # Softmax statistics in f32; normalize AFTER the PV matmul.
        m = jnp.max(att, axis=-1, keepdims=True)
        e = jnp.exp(att - m)
        denom = jnp.sum(e, axis=-1, keepdims=True)                  # (tq, 1)

        yh = jnp.dot(e.astype(jnp.bfloat16), vh,
                     preferred_element_type=jnp.float32)            # (tq, hs)
        yh = yh * pl.reciprocal(denom, approx=True)                 # EUP, near-free

        # Per-head slice of the output projection, accumulated in f32.
        acc = acc + jnp.dot(yh.astype(jnp.bfloat16), wp_ref[sl, :],
                            preferred_element_type=jnp.float32)

    o_ref[0] = acc.astype(o_ref.dtype)


def causal_self_attention(x, params, n_head):
    B, T, C = x.shape
    assert C % n_head == 0
    hs = C // n_head
    scale = 1.0 / math.sqrt(hs)

    # PyTorch nn.Linear: y = x @ W.T + b with W of shape (out, in).
    # Weights are cast to bf16 for the MXU; scale is folded into Wq / bq.
    wq = (params["Wq"].T * scale).astype(jnp.bfloat16)   # (C, C)
    wk = params["Wk"].T.astype(jnp.bfloat16)
    wv = params["Wv"].T.astype(jnp.bfloat16)
    wp = params["Wp"].T.astype(jnp.bfloat16)
    bq = (params["bq"] * scale).reshape(1, C).astype(jnp.float32)
    bk = params["bk"].reshape(1, C).astype(jnp.float32)
    bv = params["bv"].reshape(1, C).astype(jnp.float32)
    bp = params["bp"].reshape(1, C).astype(jnp.float32)

    # Query tiling keeps the (tq, T) score block bounded; single tile at small T.
    tq = T if T <= 128 else 128
    assert T % tq == 0, "T must be a multiple of the query tile size"
    num_q = T // tq

    kernel = functools.partial(_attn_kernel, n_head=n_head)

    w_spec = pl.BlockSpec((C, C), lambda b, qi: (0, 0))   # resident weights
    b_spec = pl.BlockSpec((1, C), lambda b, qi: (0, 0))   # resident biases

    return pl.pallas_call(
        kernel,
        out_shape=jax.ShapeDtypeStruct((B, T, C), x.dtype),
        grid_spec=pltpu.PrefetchScalarGridSpec(
            num_scalar_prefetch=0,
            grid=(B, num_q),
            in_specs=[
                pl.BlockSpec((1, tq, C), lambda b, qi: (b, qi, 0)),  # x (query rows)
                pl.BlockSpec((1, T, C), lambda b, qi: (b, 0, 0)),    # x (key/value rows)
                w_spec, w_spec, w_spec, w_spec,                      # wq, wk, wv, wp
                b_spec, b_spec, b_spec, b_spec,                      # bq, bk, bv, bp
            ],
            out_specs=pl.BlockSpec((1, tq, C), lambda b, qi: (b, qi, 0)),
        ),
        compiler_params=pltpu.CompilerParams(
            dimension_semantics=("parallel", "parallel")),
    )(x, x, wq, wk, wv, wp, bq, bk, bv, bp)


def reference(x, params, n_head):
    """Pure-JAX re-implementation of the PyTorch forward (eval mode)."""
    B, T, C = x.shape
    hs = C // n_head
    q = x @ params["Wq"].T + params["bq"]
    k = x @ params["Wk"].T + params["bk"]
    v = x @ params["Wv"].T + params["bv"]
    q = q.reshape(B, T, n_head, hs).transpose(0, 2, 1, 3)
    k = k.reshape(B, T, n_head, hs).transpose(0, 2, 1, 3)
    v = v.reshape(B, T, n_head, hs).transpose(0, 2, 1, 3)
    att = (q @ k.transpose(0, 1, 3, 2)) * (1.0 / math.sqrt(hs))
    att = jax.nn.softmax(att, axis=-1)
    y = att @ v
    y = y.transpose(0, 2, 1, 3).reshape(B, T, C)
    return y @ params["Wp"].T + params["bp"]


def init_params(key, n_embd):
    ks = jax.random.split(key, 8)
    std = 0.02
    return {
        "Wq": jax.random.normal(ks[0], (n_embd, n_embd), jnp.float32) * std,
        "bq": jax.random.normal(ks[1], (n_embd,), jnp.float32) * std,
        "Wk": jax.random.normal(ks[2], (n_embd, n_embd), jnp.float32) * std,
        "bk": jax.random.normal(ks[3], (n_embd,), jnp.float32) * std,
        "Wv": jax.random.normal(ks[4], (n_embd, n_embd), jnp.float32) * std,
        "bv": jax.random.normal(ks[5], (n_embd,), jnp.float32) * std,
        "Wp": jax.random.normal(ks[6], (n_embd, n_embd), jnp.float32) * std,
        "bp": jax.random.normal(ks[7], (n_embd,), jnp.float32) * std,
    }


if __name__ == "__main__":
    B, T, C = 2, 8, 32          # batch, block_size (seq), n_embd
    n_head = 4                  # hs = 8

    key = jax.random.PRNGKey(0)
    kx, kp = jax.random.split(key)
    x = jax.random.normal(kx, (B, T, C), jnp.float32)
    params = init_params(kp, C)

    out = causal_self_attention(x, params, n_head)
    out = jax.block_until_ready(out)

    ref = reference(x, params, n_head)
    assert out.shape == (B, T, C)
    # bf16 MXU operands -> loosened tolerance (softmax stats / accumulation are f32).
    assert jnp.allclose(out, ref, atol=1e-2, rtol=1e-2), (
        f"max abs diff = {jnp.max(jnp.abs(out - ref))}")

    print("KERNEL_OK")
</pallas_src>

<mosaic_0001>
module attributes {stable_mosaic.version = 11 : i64} {
  func.func @_attn_kernel(%arg0: i32, %arg1: i32, %arg2: memref<1x8x32xf32, #tpu.memory_space<vmem>>, %arg3: memref<1x8x32xf32, #tpu.memory_space<vmem>>, %arg4: memref<32x32xbf16, #tpu.memory_space<vmem>>, %arg5: memref<32x32xbf16, #tpu.memory_space<vmem>>, %arg6: memref<32x32xbf16, #tpu.memory_space<vmem>>, %arg7: memref<32x32xbf16, #tpu.memory_space<vmem>>, %arg8: memref<1x32xf32, #tpu.memory_space<vmem>>, %arg9: memref<1x32xf32, #tpu.memory_space<vmem>>, %arg10: memref<1x32xf32, #tpu.memory_space<vmem>>, %arg11: memref<1x32xf32, #tpu.memory_space<vmem>>, %arg12: memref<1x8x32xf32, #tpu.memory_space<vmem>>) attributes {dimension_semantics = [#tpu.dimension_semantics<parallel>, #tpu.dimension_semantics<parallel>], iteration_bounds = array<i64: 2, 1>, scalar_prefetch = 0 : i64, scratch_operands = 0 : i64, tpu.core_type = #tpu.core_type<tc>, window_params = [{transform_indices = @transform_0, window_bounds = array<i64: 1, 8, 32>}, {transform_indices = @transform_1, window_bounds = array<i64: 1, 8, 32>}, {pipeline_mode = #tpu.pipeline_mode<synchronous>, transform_indices = @transform_2, window_bounds = array<i64: 32, 32>}, {pipeline_mode = #tpu.pipeline_mode<synchronous>, transform_indices = @transform_3, window_bounds = array<i64: 32, 32>}, {pipeline_mode = #tpu.pipeline_mode<synchronous>, transform_indices = @transform_4, window_bounds = array<i64: 32, 32>}, {pipeline_mode = #tpu.pipeline_mode<synchronous>, transform_indices = @transform_5, window_bounds = array<i64: 32, 32>}, {pipeline_mode = #tpu.pipeline_mode<synchronous>, transform_indices = @transform_6, window_bounds = array<i64: 1, 32>}, {pipeline_mode = #tpu.pipeline_mode<synchronous>, transform_indices = @transform_7, window_bounds = array<i64: 1, 32>}, {pipeline_mode = #tpu.pipeline_mode<synchronous>, transform_indices = @transform_8, window_bounds = array<i64: 1, 32>}, {pipeline_mode = #tpu.pipeline_mode<synchronous>, transform_indices = @transform_9, window_bounds = array<i64: 1, 32>}, {transform_indices = @transform_10, window_bounds = array<i64: 1, 8, 32>}]} {
    %c0 = arith.constant 0 : index
    %c0_0 = arith.constant 0 : index
    %c0_1 = arith.constant 0 : index
    %0 = vector.load %arg2[%c0, %c0_0, %c0_1] : memref<1x8x32xf32, #tpu.memory_space<vmem>>, vector<1x8x32xf32>
    %1 = vector.shape_cast %0 : vector<1x8x32xf32> to vector<8x32xf32>
    %2 = arith.truncf %1 : vector<8x32xf32> to vector<8x32xbf16>
    %c0_2 = arith.constant 0 : index
    %c0_3 = arith.constant 0 : index
    %c0_4 = arith.constant 0 : index
    %3 = vector.load %arg3[%c0_2, %c0_3, %c0_4] : memref<1x8x32xf32, #tpu.memory_space<vmem>>, vector<1x8x32xf32>
    %4 = vector.shape_cast %3 : vector<1x8x32xf32> to vector<8x32xf32>
    %5 = arith.truncf %4 : vector<8x32xf32> to vector<8x32xbf16>
    %c0_5 = arith.constant 0 : index
    %c0_6 = arith.constant 0 : index
    %6 = vector.load %arg4[%c0_5, %c0_6] : memref<32x32xbf16, #tpu.memory_space<vmem>>, vector<32x32xbf16>
    %cst = arith.constant dense<0.000000e+00> : vector<8x32xf32>
    %7 = tpu.matmul %2, %6, %cst {dimension_numbers = #tpu.dot_dimension_numbers<[1], [0], [0], [1], [0, 0, 1, 1], [], []>} : vector<8x32xbf16>, vector<32x32xbf16>, vector<8x32xf32> -> vector<8x32xf32>
    %c0_7 = arith.constant 0 : index
    %c0_8 = arith.constant 0 : index
    %8 = vector.load %arg8[%c0_7, %c0_8] : memref<1x32xf32, #tpu.memory_space<vmem>>, vector<1x32xf32>
    %9 = vector.broadcast %8 : vector<1x32xf32> to vector<8x32xf32>
    %10 = arith.addf %7, %9 : vector<8x32xf32>
    %c0_9 = arith.constant 0 : index
    %c0_10 = arith.constant 0 : index
    %11 = vector.load %arg5[%c0_9, %c0_10] : memref<32x32xbf16, #tpu.memory_space<vmem>>, vector<32x32xbf16>
    %cst_11 = arith.constant dense<0.000000e+00> : vector<8x32xf32>
    %12 = tpu.matmul %5, %11, %cst_11 {dimension_numbers = #tpu.dot_dimension_numbers<[1], [0], [0], [1], [0, 0, 1, 1], [], []>} : vector<8x32xbf16>, vector<32x32xbf16>, vector<8x32xf32> -> vector<8x32xf32>
    %c0_12 = arith.constant 0 : index
    %c0_13 = arith.constant 0 : index
    %13 = vector.load %arg9[%c0_12, %c0_13] : memref<1x32xf32, #tpu.memory_space<vmem>>, vector<1x32xf32>
    %14 = vector.broadcast %13 : vector<1x32xf32> to vector<8x32xf32>
    %15 = arith.addf %12, %14 : vector<8x32xf32>
    %c0_14 = arith.constant 0 : index
    %c0_15 = arith.constant 0 : index
    %16 = vector.load %arg6[%c0_14, %c0_15] : memref<32x32xbf16, #tpu.memory_space<vmem>>, vector<32x32xbf16>
    %cst_16 = arith.constant dense<0.000000e+00> : vector<8x32xf32>
    %17 = tpu.matmul %5, %16, %cst_16 {dimension_numbers = #tpu.dot_dimension_numbers<[1], [0], [0], [1], [0, 0, 1, 1], [], []>} : vector<8x32xbf16>, vector<32x32xbf16>, vector<8x32xf32> -> vector<8x32xf32>
    %c0_17 = arith.constant 0 : index
    %c0_18 = arith.constant 0 : index
    %18 = vector.load %arg10[%c0_17, %c0_18] : memref<1x32xf32, #tpu.memory_space<vmem>>, vector<1x32xf32>
    %19 = vector.broadcast %18 : vector<1x32xf32> to vector<8x32xf32>
    %20 = arith.addf %17, %19 : vector<8x32xf32>
    %21 = arith.truncf %10 : vector<8x32xf32> to vector<8x32xbf16>
    %22 = arith.truncf %15 : vector<8x32xf32> to vector<8x32xbf16>
    %23 = arith.truncf %20 : vector<8x32xf32> to vector<8x32xbf16>
    %c0_19 = arith.constant 0 : index
    %c0_20 = arith.constant 0 : index
    %24 = vector.load %arg11[%c0_19, %c0_20] : memref<1x32xf32, #tpu.memory_space<vmem>>, vector<1x32xf32>
    %25 = vector.shape_cast %24 : vector<1x32xf32> to vector<1x32xf32>
    %26 = vector.broadcast %25 : vector<1x32xf32> to vector<8x32xf32>
    %27 = vector.extract_strided_slice %21 {offsets = [0, 0], sizes = [8, 8], strides = [1, 1]} : vector<8x32xbf16> to vector<8x8xbf16>
    %28 = vector.extract_strided_slice %22 {offsets = [0, 0], sizes = [8, 8], strides = [1, 1]} : vector<8x32xbf16> to vector<8x8xbf16>
    %29 = vector.extract_strided_slice %23 {offsets = [0, 0], sizes = [8, 8], strides = [1, 1]} : vector<8x32xbf16> to vector<8x8xbf16>
    %cst_21 = arith.constant dense<0.000000e+00> : vector<8x8xf32>
    %30 = tpu.matmul %27, %28, %cst_21 {dimension_numbers = #tpu.dot_dimension_numbers<[1], [1], [0], [0], [0, 0, 1, 0], [], []>} : vector<8x8xbf16>, vector<8x8xbf16>, vector<8x8xf32> -> vector<8x8xf32>
    %cst_22 = arith.constant dense<0xFF800000> : vector<8xf32>
    %31 = vector.multi_reduction <maximumf>, %30, %cst_22 [1] : vector<8x8xf32> to vector<8xf32>
    %32 = vector.shape_cast %31 : vector<8xf32> to vector<8x1xf32>
    %33 = vector.broadcast %32 : vector<8x1xf32> to vector<8x8xf32>
    %34 = arith.subf %30, %33 : vector<8x8xf32>
    %35 = math.exp %34 : vector<8x8xf32>
    %cst_23 = arith.constant dense<0.000000e+00> : vector<8xf32>
    %36 = vector.multi_reduction <add>, %35, %cst_23 [1] : vector<8x8xf32> to vector<8xf32>
    %37 = vector.shape_cast %36 : vector<8xf32> to vector<8x1xf32>
    %38 = arith.truncf %35 : vector<8x8xf32> to vector<8x8xbf16>
    %cst_24 = arith.constant dense<0.000000e+00> : vector<8x8xf32>
    %39 = tpu.matmul %38, %29, %cst_24 {dimension_numbers = #tpu.dot_dimension_numbers<[1], [0], [0], [1], [0, 0, 1, 1], [], []>} : vector<8x8xbf16>, vector<8x8xbf16>, vector<8x8xf32> -> vector<8x8xf32>
    %40 = tpu.reciprocal %37 {approx = true} : vector<8x1xf32> -> vector<8x1xf32>
    %41 = vector.broadcast %40 : vector<8x1xf32> to vector<8x8xf32>
    %42 = arith.mulf %39, %41 : vector<8x8xf32>
    %43 = arith.truncf %42 : vector<8x8xf32> to vector<8x8xbf16>
    %c0_25 = arith.constant 0 : index
    %c0_26 = arith.constant 0 : index
    %44 = vector.load %arg7[%c0_25, %c0_26] : memref<32x32xbf16, #tpu.memory_space<vmem>>, vector<8x32xbf16>
    %cst_27 = arith.constant dense<0.000000e+00> : vector<8x32xf32>
    %45 = tpu.matmul %43, %44, %cst_27 {dimension_numbers = #tpu.dot_dimension_numbers<[1], [0], [0], [1], [0, 0, 1, 1], [], []>} : vector<8x8xbf16>, vector<8x32xbf16>, vector<8x32xf32> -> vector<8x32xf32>
    %46 = arith.addf %26, %45 : vector<8x32xf32>
    %47 = vector.extract_strided_slice %21 {offsets = [0, 8], sizes = [8, 8], strides = [1, 1]} : vector<8x32xbf16> to vector<8x8xbf16>
    %48 = vector.extract_strided_slice %22 {offsets = [0, 8], sizes = [8, 8], strides = [1, 1]} : vector<8x32xbf16> to vector<8x8xbf16>
    %49 = vector.extract_strided_slice %23 {offsets = [0, 8], sizes = [8, 8], strides = [1, 1]} : vector<8x32xbf16> to vector<8x8xbf16>
    %cst_28 = arith.constant dense<0.000000e+00> : vector<8x8xf32>
    %50 = tpu.matmul %47, %48, %cst_28 {dimension_numbers = #tpu.dot_dimension_numbers<[1], [1], [0], [0], [0, 0, 1, 0], [], []>} : vector<8x8xbf16>, vector<8x8xbf16>, vector<8x8xf32> -> vector<8x8xf32>
    %cst_29 = arith.constant dense<0xFF800000> : vector<8xf32>
    %51 = vector.multi_reduction <maximumf>, %50, %cst_29 [1] : vector<8x8xf32> to vector<8xf32>
    %52 = vector.shape_cast %51 : vector<8xf32> to vector<8x1xf32>
    %53 = vector.broadcast %52 : vector<8x1xf32> to vector<8x8xf32>
    %54 = arith.subf %50, %53 : vector<8x8xf32>
    %55 = math.exp %54 : vector<8x8xf32>
    %cst_30 = arith.constant dense<0.000000e+00> : vector<8xf32>
    %56 = vector.multi_reduction <add>, %55, %cst_30 [1] : vector<8x8xf32> to vector<8xf32>
    %57 = vector.shape_cast %56 : vector<8xf32> to vector<8x1xf32>
    %58 = arith.truncf %55 : vector<8x8xf32> to vector<8x8xbf16>
    %cst_31 = arith.constant dense<0.000000e+00> : vector<8x8xf32>
    %59 = tpu.matmul %58, %49, %cst_31 {dimension_numbers = #tpu.dot_dimension_numbers<[1], [0], [0], [1], [0, 0, 1, 1], [], []>} : vector<8x8xbf16>, vector<8x8xbf16>, vector<8x8xf32> -> vector<8x8xf32>
    %60 = tpu.reciprocal %57 {approx = true} : vector<8x1xf32> -> vector<8x1xf32>
    %61 = vector.broadcast %60 : vector<8x1xf32> to vector<8x8xf32>
    %62 = arith.mulf %59, %61 : vector<8x8xf32>
    %63 = arith.truncf %62 : vector<8x8xf32> to vector<8x8xbf16>
    %c8 = arith.constant 8 : index
    %c0_32 = arith.constant 0 : index
    %64 = vector.load %arg7[%c8, %c0_32] : memref<32x32xbf16, #tpu.memory_space<vmem>>, vector<8x32xbf16>
    %cst_33 = arith.constant dense<0.000000e+00> : vector<8x32xf32>
    %65 = tpu.matmul %63, %64, %cst_33 {dimension_numbers = #tpu.dot_dimension_numbers<[1], [0], [0], [1], [0, 0, 1, 1], [], []>} : vector<8x8xbf16>, vector<8x32xbf16>, vector<8x32xf32> -> vector<8x32xf32>
    %66 = arith.addf %46, %65 : vector<8x32xf32>
    %67 = vector.extract_strided_slice %21 {offsets = [0, 16], sizes = [8, 8], strides = [1, 1]} : vector<8x32xbf16> to vector<8x8xbf16>
    %68 = vector.extract_strided_slice %22 {offsets = [0, 16], sizes = [8, 8], strides = [1, 1]} : vector<8x32xbf16> to vector<8x8xbf16>
    %69 = vector.extract_strided_slice %23 {offsets = [0, 16], sizes = [8, 8], strides = [1, 1]} : vector<8x32xbf16> to vector<8x8xbf16>
    %cst_34 = arith.constant dense<0.000000e+00> : vector<8x8xf32>
    %70 = tpu.matmul %67, %68, %cst_34 {dimension_numbers = #tpu.dot_dimension_numbers<[1], [1], [0], [0], [0, 0, 1, 0], [], []>} : vector<8x8xbf16>, vector<8x8xbf16>, vector<8x8xf32> -> vector<8x8xf32>
    %cst_35 = arith.constant dense<0xFF800000> : vector<8xf32>
    %71 = vector.multi_reduction <maximumf>, %70, %cst_35 [1] : vector<8x8xf32> to vector<8xf32>
    %72 = vector.shape_cast %71 : vector<8xf32> to vector<8x1xf32>
    %73 = vector.broadcast %72 : vector<8x1xf32> to vector<8x8xf32>
    %74 = arith.subf %70, %73 : vector<8x8xf32>
    %75 = math.exp %74 : vector<8x8xf32>
    %cst_36 = arith.constant dense<0.000000e+00> : vector<8xf32>
    %76 = vector.multi_reduction <add>, %75, %cst_36 [1] : vector<8x8xf32> to vector<8xf32>
    %77 = vector.shape_cast %76 : vector<8xf32> to vector<8x1xf32>
    %78 = arith.truncf %75 : vector<8x8xf32> to vector<8x8xbf16>
    %cst_37 = arith.constant dense<0.000000e+00> : vector<8x8xf32>
    %79 = tpu.matmul %78, %69, %cst_37 {dimension_numbers = #tpu.dot_dimension_numbers<[1], [0], [0], [1], [0, 0, 1, 1], [], []>} : vector<8x8xbf16>, vector<8x8xbf16>, vector<8x8xf32> -> vector<8x8xf32>
    %80 = tpu.reciprocal %77 {approx = true} : vector<8x1xf32> -> vector<8x1xf32>
    %81 = vector.broadcast %80 : vector<8x1xf32> to vector<8x8xf32>
    %82 = arith.mulf %79, %81 : vector<8x8xf32>
    %83 = arith.truncf %82 : vector<8x8xf32> to vector<8x8xbf16>
    %c16 = arith.constant 16 : index
    %c0_38 = arith.constant 0 : index
    %84 = vector.load %arg7[%c16, %c0_38] : memref<32x32xbf16, #tpu.memory_space<vmem>>, vector<8x32xbf16>
    %cst_39 = arith.constant dense<0.000000e+00> : vector<8x32xf32>
    %85 = tpu.matmul %83, %84, %cst_39 {dimension_numbers = #tpu.dot_dimension_numbers<[1], [0], [0], [1], [0, 0, 1, 1], [], []>} : vector<8x8xbf16>, vector<8x32xbf16>, vector<8x32xf32> -> vector<8x32xf32>
    %86 = arith.addf %66, %85 : vector<8x32xf32>
    %87 = vector.extract_strided_slice %21 {offsets = [0, 24], sizes = [8, 8], strides = [1, 1]} : vector<8x32xbf16> to vector<8x8xbf16>
    %88 = vector.extract_strided_slice %22 {offsets = [0, 24], sizes = [8, 8], strides = [1, 1]} : vector<8x32xbf16> to vector<8x8xbf16>
    %89 = vector.extract_strided_slice %23 {offsets = [0, 24], sizes = [8, 8], strides = [1, 1]} : vector<8x32xbf16> to vector<8x8xbf16>
    %cst_40 = arith.constant dense<0.000000e+00> : vector<8x8xf32>
    %90 = tpu.matmul %87, %88, %cst_40 {dimension_numbers = #tpu.dot_dimension_numbers<[1], [1], [0], [0], [0, 0, 1, 0], [], []>} : vector<8x8xbf16>, vector<8x8xbf16>, vector<8x8xf32> -> vector<8x8xf32>
    %cst_41 = arith.constant dense<0xFF800000> : vector<8xf32>
    %91 = vector.multi_reduction <maximumf>, %90, %cst_41 [1] : vector<8x8xf32> to vector<8xf32>
    %92 = vector.shape_cast %91 : vector<8xf32> to vector<8x1xf32>
    %93 = vector.broadcast %92 : vector<8x1xf32> to vector<8x8xf32>
    %94 = arith.subf %90, %93 : vector<8x8xf32>
    %95 = math.exp %94 : vector<8x8xf32>
    %cst_42 = arith.constant dense<0.000000e+00> : vector<8xf32>
    %96 = vector.multi_reduction <add>, %95, %cst_42 [1] : vector<8x8xf32> to vector<8xf32>
    %97 = vector.shape_cast %96 : vector<8xf32> to vector<8x1xf32>
    %98 = arith.truncf %95 : vector<8x8xf32> to vector<8x8xbf16>
    %cst_43 = arith.constant dense<0.000000e+00> : vector<8x8xf32>
    %99 = tpu.matmul %98, %89, %cst_43 {dimension_numbers = #tpu.dot_dimension_numbers<[1], [0], [0], [1], [0, 0, 1, 1], [], []>} : vector<8x8xbf16>, vector<8x8xbf16>, vector<8x8xf32> -> vector<8x8xf32>
    %100 = tpu.reciprocal %97 {approx = true} : vector<8x1xf32> -> vector<8x1xf32>
    %101 = vector.broadcast %100 : vector<8x1xf32> to vector<8x8xf32>
    %102 = arith.mulf %99, %101 : vector<8x8xf32>
    %103 = arith.truncf %102 : vector<8x8xf32> to vector<8x8xbf16>
    %c24 = arith.constant 24 : index
    %c0_44 = arith.constant 0 : index
    %104 = vector.load %arg7[%c24, %c0_44] : memref<32x32xbf16, #tpu.memory_space<vmem>>, vector<8x32xbf16>
    %cst_45 = arith.constant dense<0.000000e+00> : vector<8x32xf32>
    %105 = tpu.matmul %103, %104, %cst_45 {dimension_numbers = #tpu.dot_dimension_numbers<[1], [0], [0], [1], [0, 0, 1, 1], [], []>} : vector<8x8xbf16>, vector<8x32xbf16>, vector<8x32xf32> -> vector<8x32xf32>
    %106 = arith.addf %86, %105 : vector<8x32xf32>
    %c0_46 = arith.constant 0 : index
    %c0_47 = arith.constant 0 : index
    %c0_48 = arith.constant 0 : index
    %107 = vector.load %arg12[%c0_46, %c0_47, %c0_48] : memref<1x8x32xf32, #tpu.memory_space<vmem>>, vector<1x8x32xf32>
    %108 = vector.shape_cast %107 : vector<1x8x32xf32> to vector<8x32xf32>
    %109 = vector.shape_cast %106 : vector<8x32xf32> to vector<1x8x32xf32>
    tpu.vector_store %arg12[%c0_46, %c0_47, %c0_48], %109 {strides = array<i32>} : memref<1x8x32xf32, #tpu.memory_space<vmem>>, vector<1x8x32xf32>,
    return
  }
  func.func @transform_0(%arg0: i32, %arg1: i32) -> (i32, i32, i32) {
    %c0_i32 = arith.constant 0 : i32
    %c0_i32_0 = arith.constant 0 : i32
    return %arg0, %arg1, %c0_i32 : i32, i32, i32
  }
  func.func @transform_1(%arg0: i32, %arg1: i32) -> (i32, i32, i32) {
    %c0_i32 = arith.constant 0 : i32
    %c0_i32_0 = arith.constant 0 : i32
    %c0_i32_1 = arith.constant 0 : i32
    return %arg0, %c0_i32, %c0_i32_0 : i32, i32, i32
  }
  func.func @transform_2(%arg0: i32, %arg1: i32) -> (i32, i32) {
    %c0_i32 = arith.constant 0 : i32
    %c0_i32_0 = arith.constant 0 : i32
    %c0_i32_1 = arith.constant 0 : i32
    return %c0_i32, %c0_i32_0 : i32, i32
  }
  func.func @transform_3(%arg0: i32, %arg1: i32) -> (i32, i32) {
    %c0_i32 = arith.constant 0 : i32
    %c0_i32_0 = arith.constant 0 : i32
    %c0_i32_1 = arith.constant 0 : i32
    return %c0_i32, %c0_i32_0 : i32, i32
  }
  func.func @transform_4(%arg0: i32, %arg1: i32) -> (i32, i32) {
    %c0_i32 = arith.constant 0 : i32
    %c0_i32_0 = arith.constant 0 : i32
    %c0_i32_1 = arith.constant 0 : i32
    return %c0_i32, %c0_i32_0 : i32, i32
  }
  func.func @transform_5(%arg0: i32, %arg1: i32) -> (i32, i32) {
    %c0_i32 = arith.constant 0 : i32
    %c0_i32_0 = arith.constant 0 : i32
    %c0_i32_1 = arith.constant 0 : i32
    return %c0_i32, %c0_i32_0 : i32, i32
  }
  func.func @transform_6(%arg0: i32, %arg1: i32) -> (i32, i32) {
    %c0_i32 = arith.constant 0 : i32
    %c0_i32_0 = arith.constant 0 : i32
    %c0_i32_1 = arith.constant 0 : i32
    return %c0_i32, %c0_i32_0 : i32, i32
  }
  func.func @transform_7(%arg0: i32, %arg1: i32) -> (i32, i32) {
    %c0_i32 = arith.constant 0 : i32
    %c0_i32_0 = arith.constant 0 : i32
    %c0_i32_1 = arith.constant 0 : i32
    return %c0_i32, %c0_i32_0 : i32, i32
  }
  func.func @transform_8(%arg0: i32, %arg1: i32) -> (i32, i32) {
    %c0_i32 = arith.constant 0 : i32
    %c0_i32_0 = arith.constant 0 : i32
    %c0_i32_1 = arith.constant 0 : i32
    return %c0_i32, %c0_i32_0 : i32, i32
  }
  func.func @transform_9(%arg0: i32, %arg1: i32) -> (i32, i32) {
    %c0_i32 = arith.constant 0 : i32
    %c0_i32_0 = arith.constant 0 : i32
    %c0_i32_1 = arith.constant 0 : i32
    return %c0_i32, %c0_i32_0 : i32, i32
  }
  func.func @transform_10(%arg0: i32, %arg1: i32) -> (i32, i32, i32) {
    %c0_i32 = arith.constant 0 : i32
    %c0_i32_0 = arith.constant 0 : i32
    return %arg0, %arg1, %c0_i32 : i32, i32, i32
  }
}

</mosaic_0001>

<llo_original>
// kernel: tpu_custom_call.1
$region0: #{tpu_custom_call.1}
  #allocation0 [shape = 'u32[]', space=smem, size = 0x4, offset = 0x4, fixed_abs, tag = 'smem constant byte address 0x4 - core index']
  #allocation1 [shape = 'u32[144,128]{1,0:T(1,128)}', space=vmem, size = 0x12000, scoped, tag = 'internal scratch']
  %s0 = inlined_call_operand.hbm [shape: f32[2,8,32], index: 0, kind: input, shape index: {}]
  %s1 = inlined_call_operand.hbm [shape: f32[2,8,32], index: 1, kind: input, shape index: {}]
  %s2 = inlined_call_operand.hbm [shape: bf16[32,32], index: 2, kind: input, shape index: {}]
  %s3 = inlined_call_operand.hbm [shape: bf16[32,32], index: 3, kind: input, shape index: {}]
  %s4 = inlined_call_operand.hbm [shape: bf16[32,32], index: 4, kind: input, shape index: {}]
  %s5 = inlined_call_operand.hbm [shape: bf16[32,32], index: 5, kind: input, shape index: {}]
  %s6 = inlined_call_operand.vmem [shape: f32[1,32], index: 6, kind: input, shape index: {}]
  %s7 = inlined_call_operand.vmem [shape: f32[1,32], index: 7, kind: input, shape index: {}]
  %s8 = inlined_call_operand.vmem [shape: f32[1,32], index: 8, kind: input, shape index: {}]
  %s9 = inlined_call_operand.vmem [shape: f32[1,32], index: 9, kind: input, shape index: {}]
  %s10 = inlined_call_operand.hbm [shape: f32[2,8,32], index: 10, kind: output, shape index: {}]
  %s11 = sld [smem:[#allocation0]]
  $region97: #{tpu_custom_call.1} parent=0
    _
  %s13 = ssub.s32 1, %s11
  %s14 = scalar_select 0, %s13, %s11
  $region1: #{tpu_custom_call.1} parent=0
    #allocation2 [shape = 'u8[8192]{0}', space=vmem, size = 0x2000, scoped, tag = 'input window, operand 0']
    #allocation3 [shape = 's32[2]{0}', space=sflag, size = 0x8, scoped, tag = 'scoped memory for tpu_custom_call.1']
    #allocation4 [shape = 's32[2]{0}', space=sflag, size = 0x8, scoped, tag = 'scoped memory for tpu_custom_call.1']
    #allocation5 [shape = 'u8[8192]{0}', space=vmem, size = 0x2000, scoped, tag = 'input window, operand 1']
    #allocation6 [shape = 's32[2]{0}', space=sflag, size = 0x8, scoped, tag = 'scoped memory for tpu_custom_call.1']
    #allocation7 [shape = 'u8[8192]{0}', space=vmem, size = 0x2000, scoped, tag = 'input window, operand 2, single buffered']
    #allocation8 [shape = 'u8[8192]{0}', space=vmem, size = 0x2000, scoped, tag = 'input window, operand 3, single buffered']
    #allocation9 [shape = 's32[1]{0}', space=sflag, size = 0x4, scoped, tag = 'scoped memory for tpu_custom_call.1']
    #allocation10 [shape = 'u8[8192]{0}', space=vmem, size = 0x2000, scoped, tag = 'input window, operand 4, single buffered']
    #allocation11 [shape = 'u8[8192]{0}', space=vmem, size = 0x2000, scoped, tag = 'input window, operand 5, single buffered']
    #allocation12 [shape = 's32[1]{0}', space=sflag, size = 0x4, scoped, tag = 'scoped memory for tpu_custom_call.1']
    #allocation13 [shape = 'u8[8192]{0}', space=vmem, size = 0x2000, scoped, tag = 'output window, operand 0']
    %15 = vsyncpa [#allocation3], 0
    %s16 = scalar_lea.sflag [#allocation3], 1
    %17 = vsyncpa %s16, 0
    %18 = vsyncpa [#allocation6], 0
    %s19 = scalar_lea.sflag [#allocation6], 1
    %20 = vsyncpa %s19, 0
    %21 = vsyncpa [#allocation9], 0
    %22 = vsyncpa [#allocation12], 0
    %23 = vsyncpa [#allocation4], 0
    %s24 = scalar_lea.sflag [#allocation4], 1
    %25 = vsyncpa %s24, 0
    loop: start=0, step=1, limit=4
    $region2: #{tpu_custom_call.1} parent=1 // loop_pre_header
      _
    $region3: #{tpu_custom_call.1} parent=1 // loop_header
      %s27 = sphi 0, %s31
      %p28 = scmp.ge.s32.totalorder %s27, 4
      %s34 = sphi 0, %s46
      %s35 = sphi 0, %s42
      %s36 = sphi 0, %s34
      %s37 = sphi 0, %s35
      %s38 = sphi 0, %s36
      %s39 = sphi 0, %s37
      %s51 = sphi 0, %s53
      %s54 = sphi 0, %s51
      %s55 = sphi 0, %s54
      %s71 = sphi 0, %s55
      %s77 = sphi 0, %s79
      %s80 = sphi 0, %s77
      %s81 = sphi 0, %s80
      %s97 = sphi 0, %s81
      %s101 = sphi 0, %s101
      %s103 = sphi 0, %s101
      %s104 = sphi 0, %s103
      %s118 = sphi 0, %s104
      %s122 = sphi 0, %s122
      %s124 = sphi 0, %s122
      %s125 = sphi 0, %s124
      %s139 = sphi 0, %s125
      %s143 = sphi 0, %s143
      %s145 = sphi 0, %s143
      %s146 = sphi 0, %s145
      %s160 = sphi 0, %s146
      %s164 = sphi 0, %s164
      %s166 = sphi 0, %s164
      %s167 = sphi 0, %s166
      %s181 = sphi 0, %s167
      %s185 = sphi 0, %s185
      %s187 = sphi 0, %s185
      %s188 = sphi 0, %s187
      %s202 = sphi 0, %s188
      %s206 = sphi 0, %s206
      %s208 = sphi 0, %s206
      %s209 = sphi 0, %s208
      %s223 = sphi 0, %s209
      %s227 = sphi 0, %s227
      %s229 = sphi 0, %s227
      %s230 = sphi 0, %s229
      %s244 = sphi 0, %s230
      %s248 = sphi 0, %s248
      %s250 = sphi 0, %s248
      %s251 = sphi 0, %s250
      %s265 = sphi 0, %s251
      %s273 = sphi 0, %s275
      %s276 = sphi 0, %s273
      %s277 = sphi 0, %s276
      %s293 = sphi 0, %s277
    $region4: #{tpu_custom_call.1} parent=1 // loop_header_branch
      %30 = sbr.rel (%p28) target = $region8
    $region5: #{tpu_custom_call.1} parent=1 // loop_body
      %s32 = ssub.s32 %s27, 1
      %s33 = ssub.s32 %s27, 2
      %s40 = sadd.s32 1, %s35
      %p41 = scmp.ge.s32.totalorder %s40, 1
      %s42 = scalar_select %p41, 0, %s40
      %s43 = sadd.s32 1, %s34
      %s44 = scalar_select %p41, %s43, %s34
      %p45 = scmp.ge.s32.totalorder %s44, 2
      %s46 = scalar_select %p45, 0, %s44
      %s47 = ssub.s32 %s34, %s46
      %s48 = ssub.s32 %s35, %s42
      %s49 = sor.u32 %s47, %s48
      %p50 = scmp.eq.s32.totalorder %s49, 0
      %s52 = sadd.s32 %s51, 1
      %s53 = scalar_select %p50, %s51, %s52
      %p56 = pneg %p50
      %p57 = scmp.eq.s32.totalorder %s27, 1
      %p58 = por %p56, %p57
      %p59 = scmp.ne.s32.totalorder %s51, %s54
      %p60 = scmp.eq.s32.totalorder %s27, 0
      %p61 = por %p59, %p60
      %p62 = scmp.ne.s32.totalorder %s51, %s54
      %p63 = scmp.eq.s32.totalorder %s32, 1
      %p64 = por %p62, %p63
      %p65 = scmp.ne.s32.totalorder %s54, %s55
      %p66 = scmp.eq.s32.totalorder %s32, 0
      %p67 = por %p65, %p66
      %p68 = scmp.ne.s32.totalorder %s54, %s55
      %p69 = scmp.eq.s32.totalorder %s33, 1
      %p70 = por %p68, %p69
      %p72 = scmp.ne.s32.totalorder %s55, %s71
      %p73 = scmp.eq.s32.totalorder %s33, 0
      %p74 = por %p72, %p73
      %s75 = ssub.s32 %s34, %s46
      %p76 = scmp.eq.s32.totalorder %s75, 0
      %s78 = sadd.s32 %s77, 1
      %s79 = scalar_select %p76, %s77, %s78
      %p82 = pneg %p76
      %p83 = scmp.eq.s32.totalorder %s27, 1
      %p84 = por %p82, %p83
      %p85 = scmp.ne.s32.totalorder %s77, %s80
      %p86 = scmp.eq.s32.totalorder %s27, 0
      %p87 = por %p85, %p86
      %p88 = scmp.ne.s32.totalorder %s77, %s80
      %p89 = scmp.eq.s32.totalorder %s32, 1
      %p90 = por %p88, %p89
      %p91 = scmp.ne.s32.totalorder %s80, %s81
      %p92 = scmp.eq.s32.totalorder %s32, 0
      %p93 = por %p91, %p92
      %p94 = scmp.ne.s32.totalorder %s80, %s81
      %p95 = scmp.eq.s32.totalorder %s33, 1
      %p96 = por %p94, %p95
      %p98 = scmp.ne.s32.totalorder %s81, %s97
      %p99 = scmp.eq.s32.totalorder %s33, 0
      %p100 = por %p98, %p99
      %s102 = sadd.s32 %s101, 1
      %p105 = scmp.eq.s32.totalorder %s27, 1
      %p106 = scmp.ne.s32.totalorder %s101, %s103
      %p107 = scmp.eq.s32.totalorder %s27, 0
      %p108 = por %p106, %p107
      %p109 = scmp.ne.s32.totalorder %s101, %s103
      %p110 = scmp.eq.s32.totalorder %s32, 1
      %p111 = por %p109, %p110
      %p112 = scmp.ne.s32.totalorder %s103, %s104
      %p113 = scmp.eq.s32.totalorder %s32, 0
      %p114 = por %p112, %p113
      %p115 = scmp.ne.s32.totalorder %s103, %s104
      %p116 = scmp.eq.s32.totalorder %s33, 1
      %p117 = por %p115, %p116
      %p119 = scmp.ne.s32.totalorder %s104, %s118
      %p120 = scmp.eq.s32.totalorder %s33, 0
      %p121 = por %p119, %p120
      %s123 = sadd.s32 %s122, 1
      %p126 = scmp.eq.s32.totalorder %s27, 1
      %p127 = scmp.ne.s32.totalorder %s122, %s124
      %p128 = scmp.eq.s32.totalorder %s27, 0
      %p129 = por %p127, %p128
      %p130 = scmp.ne.s32.totalorder %s122, %s124
      %p131 = scmp.eq.s32.totalorder %s32, 1
      %p132 = por %p130, %p131
      %p133 = scmp.ne.s32.totalorder %s124, %s125
      %p134 = scmp.eq.s32.totalorder %s32, 0
      %p135 = por %p133, %p134
      %p136 = scmp.ne.s32.totalorder %s124, %s125
      %p137 = scmp.eq.s32.totalorder %s33, 1
      %p138 = por %p136, %p137
      %p140 = scmp.ne.s32.totalorder %s125, %s139
      %p141 = scmp.eq.s32.totalorder %s33, 0
      %p142 = por %p140, %p141
      %s144 = sadd.s32 %s143, 1
      %p147 = scmp.eq.s32.totalorder %s27, 1
      %p148 = scmp.ne.s32.totalorder %s143, %s145
      %p149 = scmp.eq.s32.totalorder %s27, 0
      %p150 = por %p148, %p149
      %p151 = scmp.ne.s32.totalorder %s143, %s145
      %p152 = scmp.eq.s32.totalorder %s32, 1
      %p153 = por %p151, %p152
      %p154 = scmp.ne.s32.totalorder %s145, %s146
      %p155 = scmp.eq.s32.totalorder %s32, 0
      %p156 = por %p154, %p155
      %p157 = scmp.ne.s32.totalorder %s145, %s146
      %p158 = scmp.eq.s32.totalorder %s33, 1
      %p159 = por %p157, %p158
      %p161 = scmp.ne.s32.totalorder %s146, %s160
      %p162 = scmp.eq.s32.totalorder %s33, 0
      %p163 = por %p161, %p162
      %s165 = sadd.s32 %s164, 1
      %p168 = scmp.eq.s32.totalorder %s27, 1
      %p169 = scmp.ne.s32.totalorder %s164, %s166
      %p170 = scmp.eq.s32.totalorder %s27, 0
      %p171 = por %p169, %p170
      %p172 = scmp.ne.s32.totalorder %s164, %s166
      %p173 = scmp.eq.s32.totalorder %s32, 1
      %p174 = por %p172, %p173
      %p175 = scmp.ne.s32.totalorder %s166, %s167
      %p176 = scmp.eq.s32.totalorder %s32, 0
      %p177 = por %p175, %p176
      %p178 = scmp.ne.s32.totalorder %s166, %s167
      %p179 = scmp.eq.s32.totalorder %s33, 1
      %p180 = por %p178, %p179
      %p182 = scmp.ne.s32.totalorder %s167, %s181
      %p183 = scmp.eq.s32.totalorder %s33, 0
      %p184 = por %p182, %p183
      %s186 = sadd.s32 %s185, 1
      %p189 = scmp.eq.s32.totalorder %s27, 1
      %p190 = scmp.ne.s32.totalorder %s185, %s187
      %p191 = scmp.eq.s32.totalorder %s27, 0
      %p192 = por %p190, %p191
      %p193 = scmp.ne.s32.totalorder %s185, %s187
      %p194 = scmp.eq.s32.totalorder %s32, 1
      %p195 = por %p193, %p194
      %p196 = scmp.ne.s32.totalorder %s187, %s188
      %p197 = scmp.eq.s32.totalorder %s32, 0
      %p198 = por %p196, %p197
      %p199 = scmp.ne.s32.totalorder %s187, %s188
      %p200 = scmp.eq.s32.totalorder %s33, 1
      %p201 = por %p199, %p200
      %p203 = scmp.ne.s32.totalorder %s188, %s202
      %p204 = scmp.eq.s32.totalorder %s33, 0
      %p205 = por %p203, %p204
      %s207 = sadd.s32 %s206, 1
      %p210 = scmp.eq.s32.totalorder %s27, 1
      %p211 = scmp.ne.s32.totalorder %s206, %s208
      %p212 = scmp.eq.s32.totalorder %s27, 0
      %p213 = por %p211, %p212
      %p214 = scmp.ne.s32.totalorder %s206, %s208
      %p215 = scmp.eq.s32.totalorder %s32, 1
      %p216 = por %p214, %p215
      %p217 = scmp.ne.s32.totalorder %s208, %s209
      %p218 = scmp.eq.s32.totalorder %s32, 0
      %p219 = por %p217, %p218
      %p220 = scmp.ne.s32.totalorder %s208, %s209
      %p221 = scmp.eq.s32.totalorder %s33, 1
      %p222 = por %p220, %p221
      %p224 = scmp.ne.s32.totalorder %s209, %s223
      %p225 = scmp.eq.s32.totalorder %s33, 0
      %p226 = por %p224, %p225
      %s228 = sadd.s32 %s227, 1
      %p231 = scmp.eq.s32.totalorder %s27, 1
      %p232 = scmp.ne.s32.totalorder %s227, %s229
      %p233 = scmp.eq.s32.totalorder %s27, 0
      %p234 = por %p232, %p233
      %p235 = scmp.ne.s32.totalorder %s227, %s229
      %p236 = scmp.eq.s32.totalorder %s32, 1
      %p237 = por %p235, %p236
      %p238 = scmp.ne.s32.totalorder %s229, %s230
      %p239 = scmp.eq.s32.totalorder %s32, 0
      %p240 = por %p238, %p239
      %p241 = scmp.ne.s32.totalorder %s229, %s230
      %p242 = scmp.eq.s32.totalorder %s33, 1
      %p243 = por %p241, %p242
      %p245 = scmp.ne.s32.totalorder %s230, %s244
      %p246 = scmp.eq.s32.totalorder %s33, 0
      %p247 = por %p245, %p246
      %s249 = sadd.s32 %s248, 1
      %p252 = scmp.eq.s32.totalorder %s27, 1
      %p253 = scmp.ne.s32.totalorder %s248, %s250
      %p254 = scmp.eq.s32.totalorder %s27, 0
      %p255 = por %p253, %p254
      %p256 = scmp.ne.s32.totalorder %s248, %s250
      %p257 = scmp.eq.s32.totalorder %s32, 1
      %p258 = por %p256, %p257
      %p259 = scmp.ne.s32.totalorder %s250, %s251
      %p260 = scmp.eq.s32.totalorder %s32, 0
      %p261 = por %p259, %p260
      %p262 = scmp.ne.s32.totalorder %s250, %s251
      %p263 = scmp.eq.s32.totalorder %s33, 1
      %p264 = por %p262, %p263
      %p266 = scmp.ne.s32.totalorder %s251, %s265
      %p267 = scmp.eq.s32.totalorder %s33, 0
      %p268 = por %p266, %p267
      %s269 = ssub.s32 %s34, %s46
      %s270 = ssub.s32 %s35, %s42
      %s271 = sor.u32 %s269, %s270
      %p272 = scmp.eq.s32.totalorder %s271, 0
      %s274 = sadd.s32 %s273, 1
      %s275 = scalar_select %p272, %s273, %s274
      %p278 = pneg %p272
      %p279 = scmp.eq.s32.totalorder %s27, 1
      %p280 = por %p278, %p279
      %p281 = scmp.ne.s32.totalorder %s273, %s276
      %p282 = scmp.eq.s32.totalorder %s27, 0
      %p283 = por %p281, %p282
      %p284 = scmp.ne.s32.totalorder %s273, %s276
      %p285 = scmp.eq.s32.totalorder %s32, 1
      %p286 = por %p284, %p285
      %p287 = scmp.ne.s32.totalorder %s276, %s277
      %p288 = scmp.eq.s32.totalorder %s32, 0
      %p289 = por %p287, %p288
      %p290 = scmp.ne.s32.totalorder %s276, %s277
      %p291 = scmp.eq.s32.totalorder %s33, 1
      %p292 = por %p290, %p291
      %p294 = scmp.ne.s32.totalorder %s277, %s293
      %p295 = scmp.eq.s32.totalorder %s33, 0
      %p296 = por %p294, %p295
      %p297 = scmp.le.s32.totalorder 1, %s27
      %p298 = scmp.lt.s32.totalorder %s27, 3
      %p299 = pnand %p297, %p298
      %p300 = pneg %p299
      // Predicated region
      $region9: #{tpu_custom_call.1} parent=5 // pred_check
        _
      $region10: #{tpu_custom_call.1} parent=5 // pred_check_branch
        %302 = sbr.rel (%p299) target = $region12
      $region11: #{tpu_custom_call.1} parent=5 // pred_region
        %s303 = ssub.s32 %s27, 1
        // Predicated region
        $region13: #{tpu_custom_call.1} parent=11 // pred_check
          %p304 = pneg %p114
        $region14: #{tpu_custom_call.1} parent=11 // pred_check_branch
          %306 = sbr.rel (%p304) target = $region16
        $region15: #{tpu_custom_call.1} parent=11 // pred_region
          %s308 = ssub.s32 256, 256
          %309 = vsyncadd [#allocation6], %s308
          %s310 = sshll.u32 [#allocation7], 4
          %s311 = int_to_ptr.vmem [resolvable:$true] %s310
          %316 = dma.hbm_to_vmem [thread:$0]  %s2, 256, %s311, [#allocation6], 64, 64, 4
        $region16: #{tpu_custom_call.1} parent=11 // pred_fallthru
          _
        // Predicated region
        $region17: #{tpu_custom_call.1} parent=11 // pred_check
          %p317 = pneg %p135
        $region18: #{tpu_custom_call.1} parent=11 // pred_check_branch
          %319 = sbr.rel (%p317) target = $region20
        $region19: #{tpu_custom_call.1} parent=11 // pred_region
          %s321 = ssub.s32 256, 256
          %322 = vsyncadd [#allocation9], %s321
          %s323 = sshll.u32 [#allocation8], 4
          %s324 = int_to_ptr.vmem [resolvable:$true] %s323
          %329 = dma.hbm_to_vmem [thread:$0]  %s3, 256, %s324, [#allocation9], 64, 64, 4
        $region20: #{tpu_custom_call.1} parent=11 // pred_fallthru
          _
        // Predicated region
        $region21: #{tpu_custom_call.1} parent=11 // pred_check
          %p330 = pneg %p156
        $region22: #{tpu_custom_call.1} parent=11 // pred_check_branch
          %332 = sbr.rel (%p330) target = $region24
        $region23: #{tpu_custom_call.1} parent=11 // pred_region
          %s334 = ssub.s32 256, 256
          %335 = vsyncadd [#allocation9], %s334
          %s336 = sshll.u32 [#allocation10], 4
          %s337 = int_to_ptr.vmem [resolvable:$true] %s336
          %342 = dma.hbm_to_vmem [thread:$0]  %s4, 256, %s337, [#allocation9], 64, 64, 4
        $region24: #{tpu_custom_call.1} parent=11 // pred_fallthru
          _
        // Predicated region
        $region25: #{tpu_custom_call.1} parent=11 // pred_check
          %p343 = pneg %p177
        $region26: #{tpu_custom_call.1} parent=11 // pred_check_branch
          %345 = sbr.rel (%p343) target = $region28
        $region27: #{tpu_custom_call.1} parent=11 // pred_region
          %s347 = ssub.s32 256, 256
          %348 = vsyncadd [#allocation12], %s347
          %s349 = sshll.u32 [#allocation11], 4
          %s350 = int_to_ptr.vmem [resolvable:$true] %s349
          %355 = dma.hbm_to_vmem [thread:$0]  %s5, 256, %s350, [#allocation12], 64, 64, 4
        $region28: #{tpu_custom_call.1} parent=11 // pred_fallthru
          _
        // Predicated region
        $region29: #{tpu_custom_call.1} parent=11 // pred_check
          %p356 = pneg %p198
        $region30: #{tpu_custom_call.1} parent=11 // pred_check_branch
          %358 = sbr.rel (%p356) target = $region32
        $region31: #{tpu_custom_call.1} parent=11 // pred_region
          _
        $region32: #{tpu_custom_call.1} parent=11 // pred_fallthru
          _
        // Predicated region
        $region33: #{tpu_custom_call.1} parent=11 // pred_check
          %p359 = pneg %p219
        $region34: #{tpu_custom_call.1} parent=11 // pred_check_branch
          %361 = sbr.rel (%p359) target = $region36
        $region35: #{tpu_custom_call.1} parent=11 // pred_region
          _
        $region36: #{tpu_custom_call.1} parent=11 // pred_fallthru
          _
        // Predicated region
        $region37: #{tpu_custom_call.1} parent=11 // pred_check
          %p362 = pneg %p240
        $region38: #{tpu_custom_call.1} parent=11 // pred_check_branch
          %364 = sbr.rel (%p362) target = $region40
        $region39: #{tpu_custom_call.1} parent=11 // pred_region
          _
        $region40: #{tpu_custom_call.1} parent=11 // pred_fallthru
          _
        // Predicated region
        $region41: #{tpu_custom_call.1} parent=11 // pred_check
          %p365 = pneg %p261
        $region42: #{tpu_custom_call.1} parent=11 // pred_check_branch
          %367 = sbr.rel (%p365) target = $region44
        $region43: #{tpu_custom_call.1} parent=11 // pred_region
          _
        $region44: #{tpu_custom_call.1} parent=11 // pred_fallthru
          _
      $region12: #{tpu_custom_call.1} parent=5 // pred_fallthru
        _
      %p368 = scmp.lt.s32.totalorder %s27, 2
      // Predicated region
      $region45: #{tpu_custom_call.1} parent=5 // pred_check
        %p369 = pneg %p368
      $region46: #{tpu_custom_call.1} parent=5 // pred_check_branch
        %371 = sbr.rel (%p369) target = $region48
      $region47: #{tpu_custom_call.1} parent=5 // pred_region
        // Predicated region
        $region49: #{tpu_custom_call.1} parent=47 // pred_check
          %p372 = pneg %p61
        $region50: #{tpu_custom_call.1} parent=47 // pred_check_branch
          %374 = sbr.rel (%p372) target = $region52
        $region51: #{tpu_custom_call.1} parent=47 // pred_region
          %s375 = sand.u32 %s51, 1
          %s376 = scalar_lea.sflag [#allocation3], %s375
          %s377 = sand.u32 %s51, 1
          %s378 = smul.addr %s377, 8
          %s379 = scalar_lea.vmem [#allocation2], %s378
          %s381 = ssub.s32 128, 128
          %382 = vsyncadd %s376, %s381
          %s383 = sadd.s32 %s35, %s34
          %s384 = smul.addr %s383, 128
          %s385 = scalar_lea.hbm %s0, %s384
          %s387 = sshll.u32 %s379, 4
          %s388 = int_to_ptr.vmem [resolvable:$true] %s387
          %390 = dma.hbm_to_vmem [thread:$0]  %s385, 128, %s388, %s376
        $region52: #{tpu_custom_call.1} parent=47 // pred_fallthru
          _
        // Predicated region
        $region53: #{tpu_custom_call.1} parent=47 // pred_check
          %p391 = pneg %p87
        $region54: #{tpu_custom_call.1} parent=47 // pred_check_branch
          %393 = sbr.rel (%p391) target = $region56
        $region55: #{tpu_custom_call.1} parent=47 // pred_region
          %s394 = sand.u32 %s27, 1
          %s395 = scalar_lea.sflag [#allocation6], %s394
          %s396 = sand.u32 %s77, 1
          %s397 = smul.addr %s396, 8
          %s398 = scalar_lea.vmem [#allocation5], %s397
          %s400 = ssub.s32 128, 128
          %401 = vsyncadd %s395, %s400
          %s402 = smul.addr %s34, 128
          %s403 = scalar_lea.hbm %s1, %s402
          %s405 = sshll.u32 %s398, 4
          %s406 = int_to_ptr.vmem [resolvable:$true] %s405
          %408 = dma.hbm_to_vmem [thread:$0]  %s403, 128, %s406, %s395
        $region56: #{tpu_custom_call.1} parent=47 // pred_fallthru
          _
      $region48: #{tpu_custom_call.1} parent=5 // pred_fallthru
        _
      %p409 = scmp.le.s32.totalorder 1, %s27
      %p410 = scmp.lt.s32.totalorder %s27, 3
      %p411 = pnand %p409, %p410
      %p412 = pneg %p411
      // Predicated region
      $region57: #{tpu_custom_call.1} parent=5 // pred_check
        _
      $region58: #{tpu_custom_call.1} parent=5 // pred_check_branch
        %414 = sbr.rel (%p411) target = $region60
      $region59: #{tpu_custom_call.1} parent=5 // pred_region
        %s415 = ssub.s32 %s27, 1
        %s416 = sand.u32 %s54, 1
        %s417 = scalar_lea.sflag [#allocation3], %s416
        %s418 = sand.u32 %s54, 1
        %s419 = smul.addr %s418, 8
        %s420 = scalar_lea.vmem [#allocation2], %s419
        // Predicated region
        $region61: #{tpu_custom_call.1} parent=59 // pred_check
          %p421 = pneg %p67
        $region62: #{tpu_custom_call.1} parent=59 // pred_check_branch
          %423 = sbr.rel (%p421) target = $region64
        $region63: #{tpu_custom_call.1} parent=59 // pred_region
          %424 = dma.done %s417, 128
        $region64: #{tpu_custom_call.1} parent=59 // pred_fallthru
          _
        %s425 = sand.u32 %s32, 1
        %s426 = scalar_lea.sflag [#allocation6], %s425
        %s427 = sand.u32 %s80, 1
        %s428 = smul.addr %s427, 8
        %s429 = scalar_lea.vmem [#allocation5], %s428
        // Predicated region
        $region65: #{tpu_custom_call.1} parent=59 // pred_check
          %p430 = pneg %p93
        $region66: #{tpu_custom_call.1} parent=59 // pred_check_branch
          %432 = sbr.rel (%p430) target = $region68
        $region67: #{tpu_custom_call.1} parent=59 // pred_region
          %433 = dma.done %s426, 128
        $region68: #{tpu_custom_call.1} parent=59 // pred_fallthru
          _
        // Predicated region
        $region69: #{tpu_custom_call.1} parent=59 // pred_check
          %p434 = pneg %p114
        $region70: #{tpu_custom_call.1} parent=59 // pred_check_branch
          %436 = sbr.rel (%p434) target = $region72
        $region71: #{tpu_custom_call.1} parent=59 // pred_region
          %437 = dma.done [#allocation6], 256
        $region72: #{tpu_custom_call.1} parent=59 // pred_fallthru
          _
        // Predicated region
        $region73: #{tpu_custom_call.1} parent=59 // pred_check
          %p438 = pneg %p135
        $region74: #{tpu_custom_call.1} parent=59 // pred_check_branch
          %440 = sbr.rel (%p438) target = $region76
        $region75: #{tpu_custom_call.1} parent=59 // pred_region
          %441 = dma.done [#allocation9], 256
        $region76: #{tpu_custom_call.1} parent=59 // pred_fallthru
          _
        // Predicated region
        $region77: #{tpu_custom_call.1} parent=59 // pred_check
          %p442 = pneg %p156
        $region78: #{tpu_custom_call.1} parent=59 // pred_check_branch
          %444 = sbr.rel (%p442) target = $region80
        $region79: #{tpu_custom_call.1} parent=59 // pred_region
          %445 = dma.done [#allocation9], 256
        $region80: #{tpu_custom_call.1} parent=59 // pred_fallthru
          _
        // Predicated region
        $region81: #{tpu_custom_call.1} parent=59 // pred_check
          %p446 = pneg %p177
        $region82: #{tpu_custom_call.1} parent=59 // pred_check_branch
          %448 = sbr.rel (%p446) target = $region84
        $region83: #{tpu_custom_call.1} parent=59 // pred_region
          %449 = dma.done [#allocation12], 256
        $region84: #{tpu_custom_call.1} parent=59 // pred_fallthru
          _
        %s450 = sand.u32 %s54, 1
        %s451 = scalar_lea.sflag [#allocation3], %s450
        %s452 = sand.u32 %s54, 1
        %s453 = smul.addr %s452, 8
        %s454 = scalar_lea.vmem [#allocation2], %s453
        %p455 = pneg %p67
        %p456 = pneg %p64
        %s457 = sand.u32 %s32, 1
        %s458 = scalar_lea.sflag [#allocation6], %s457
        %s459 = sand.u32 %s80, 1
        %s460 = smul.addr %s459, 8
        %s461 = scalar_lea.vmem [#allocation5], %s460
        %p462 = pneg %p93
        %p463 = pneg %p90
        %p464 = pneg %p114
        %p465 = pneg %p111
        %p466 = pneg %p135
        %p467 = pneg %p132
        %p468 = pneg %p156
        %p469 = pneg %p153
        %p470 = pneg %p177
        %p471 = pneg %p174
        %p472 = pneg %p198
        %p473 = pneg %p195
        %p474 = pneg %p219
        %p475 = pneg %p216
        %p476 = pneg %p240
        %p477 = pneg %p237
        %p478 = pneg %p261
        %p479 = pneg %p258
        %p480 = pneg %p289
        %p481 = pneg %p286
        %s482 = sand.u32 %s276, 1
        %s483 = scalar_lea.sflag [#allocation4], %s482
        %s484 = sand.u32 %s276, 1
        %s485 = smul.addr %s484, 8
        %s486 = scalar_lea.vmem [#allocation13], %s485
        %v488 = vld [vmem:[%s420] sm:$0xff]
        %v489 = vpack.c.bf16 %v488, %v488
        %v490 = vld [vmem:[%s429] sm:$0xff]
        %v491 = vpack.c.bf16 %v490, %v490
        %v492 = vld [vmem:[#allocation7] sm:$0xf]
        %v493 = vld [vmem:[#allocation7 + $0x4] sm:$0xf]
        %v494 = vld [vmem:[#allocation7 + $0x8] sm:$0xf]
        %v495 = vld [vmem:[#allocation7 + $0xc] sm:$0xf]
        %v496 = vld [vmem:[%s6] sm:$0x1]
        %v498 = vlaneseq
        %v499 = vshrl.u32 %v498, 7
        %v500 = vsub.s32 0, %v499
        %v501 = vrot.slane %v496, %v500
        %v507 = vunpack.c.l.b16 %v492
        %v508 = vunpack.c.l.b16 %v493
        %v509 = vunpack.c.l.b16 %v494
        %v510 = vunpack.c.l.b16 %v495
        %v511 = vpack.c.b16 %v508, %v507
        %v512 = vpack.c.b16 %v510, %v509
        %vm515 = vcmask 261120
        %v517 = vsel %vm515, %v489, 0
        %519 = vmatprep.subr.bf16.mxu0 0
        %520 = vmatpush1.bf16.msra.mxu0 0
        %521 = vmatprep.subr.bf16.mxu0 0
        %522 = vmatpush1.bf16.msra.mxu0 0
        %523 = vmatprep.subr.bf16.mxu0 0
        %524 = vmatpush1.bf16.msra.mxu0 0
        %525 = vmatprep.subr.bf16.mxu0 0
        %526 = vmatpush1.bf16.msra.mxu0 0
        %527 = vmatprep.subr.bf16.mxu0 0
        %528 = vmatpush1.bf16.msra.mxu0 0
        %529 = vmatprep.subr.bf16.mxu0 0
        %530 = vmatpush1.bf16.msra.mxu0 0
        %531 = vmatprep.subr.bf16.mxu0 0
        %532 = vmatpush1.bf16.msra.mxu0 %v512
        %533 = vmatprep.subr.bf16.mxu0 0
        %534 = vmatpush1.bf16.msra.mxu0 %v511
        %535 = vmatprep.subr.bf16.mxu0 0
        %536 = vmatpush2.bf16.msra.mxu0 0
        %537 = vmatprep.subr.bf16.mxu0 0
        %538 = vmatpush2.bf16.msra.mxu0 0
        %539 = vmatprep.subr.bf16.mxu0 0
        %540 = vmatpush2.bf16.msra.mxu0 0
        %541 = vmatprep.subr.bf16.mxu0 0
        %542 = vmatpush2.bf16.msra.mxu0 0
        %543 = vmatprep.subr.bf16.mxu0 0
        %544 = vmatpush2.bf16.msra.mxu0 0
        %545 = vmatprep.subr.bf16.mxu0 0
        %546 = vmatpush2.bf16.msra.mxu0 0
        %547 = vmatprep.subr.bf16.mxu0 0
        %548 = vmatpush2.bf16.msra.mxu0 0
        %549 = vmatprep.subr.bf16.mxu0 0
        %550 = vmatpush2.bf16.msra.mxu0 0
        %551 = vmatprep.mubr.bf16.mxu0 0
        %552 = vmatmul.mubr.bf16.gmra.mxu0 %v517
        %v553 = vpop.f32.mrf.mxu0
        %v554 = vadd.f32 %v501, %v553
        %v555 = vpop.f32.mrf.mxu0
        %v556 = vpop.f32.mrf.mxu0
        %v557 = vpop.f32.mrf.mxu0
        %558 = vdwg.mxu0
        %v559 = vld [vmem:[#allocation8] sm:$0xf]
        %v560 = vld [vmem:[#allocation8 + $0x4] sm:$0xf]
        %v561 = vld [vmem:[#allocation8 + $0x8] sm:$0xf]
        %v562 = vld [vmem:[#allocation8 + $0xc] sm:$0xf]
        %v563 = vld [vmem:[%s7] sm:$0x1]
        %v565 = vlaneseq
        %v566 = vshrl.u32 %v565, 7
        %v567 = vsub.s32 0, %v566
        %v568 = vrot.slane %v563, %v567
        %v574 = vunpack.c.l.b16 %v559
        %v575 = vunpack.c.l.b16 %v560
        %v576 = vunpack.c.l.b16 %v561
        %v577 = vunpack.c.l.b16 %v562
        %v578 = vpack.c.b16 %v575, %v574
        %v579 = vpack.c.b16 %v577, %v576
        %v583 = vsel %vm515, %v491, 0
        %585 = vmatprep.subr.bf16.mxu0 0
        %586 = vmatpush1.bf16.msra.mxu0 0
        %587 = vmatprep.subr.bf16.mxu0 0
        %588 = vmatpush1.bf16.msra.mxu0 0
        %589 = vmatprep.subr.bf16.mxu0 0
        %590 = vmatpush1.bf16.msra.mxu0 0
        %591 = vmatprep.subr.bf16.mxu0 0
        %592 = vmatpush1.bf16.msra.mxu0 0
        %593 = vmatprep.subr.bf16.mxu0 0
        %594 = vmatpush1.bf16.msra.mxu0 0
        %595 = vmatprep.subr.bf16.mxu0 0
        %596 = vmatpush1.bf16.msra.mxu0 0
        %597 = vmatprep.subr.bf16.mxu0 0
        %598 = vmatpush1.bf16.msra.mxu0 %v579
        %599 = vmatprep.subr.bf16.mxu0 0
        %600 = vmatpush1.bf16.msra.mxu0 %v578
        %601 = vmatprep.subr.bf16.mxu0 0
        %602 = vmatpush2.bf16.msra.mxu0 0
        %603 = vmatprep.subr.bf16.mxu0 0
        %604 = vmatpush2.bf16.msra.mxu0 0
        %605 = vmatprep.subr.bf16.mxu0 0
        %606 = vmatpush2.bf16.msra.mxu0 0
        %607 = vmatprep.subr.bf16.mxu0 0
        %608 = vmatpush2.bf16.msra.mxu0 0
        %609 = vmatprep.subr.bf16.mxu0 0
        %610 = vmatpush2.bf16.msra.mxu0 0
        %611 = vmatprep.subr.bf16.mxu0 0
        %612 = vmatpush2.bf16.msra.mxu0 0
        %613 = vmatprep.subr.bf16.mxu0 0
        %614 = vmatpush2.bf16.msra.mxu0 0
        %615 = vmatprep.subr.bf16.mxu0 0
        %616 = vmatpush2.bf16.msra.mxu0 0
        %617 = vmatprep.mubr.bf16.mxu0 0
        %618 = vmatmul.mubr.bf16.gmra.mxu0 %v583
        %v619 = vpop.f32.mrf.mxu0
        %v620 = vadd.f32 %v568, %v619
        %v621 = vpop.f32.mrf.mxu0
        %v622 = vpop.f32.mrf.mxu0
        %v623 = vpop.f32.mrf.mxu0
        %624 = vdwg.mxu0
        %v625 = vld [vmem:[#allocation10] sm:$0xf]
        %v626 = vld [vmem:[#allocation10 + $0x4] sm:$0xf]
        %v627 = vld [vmem:[#allocation10 + $0x8] sm:$0xf]
        %v628 = vld [vmem:[#allocation10 + $0xc] sm:$0xf]
        %v629 = vld [vmem:[%s8] sm:$0x1]
        %v631 = vlaneseq
        %v632 = vshrl.u32 %v631, 7
        %v633 = vsub.s32 0, %v632
        %v634 = vrot.slane %v629, %v633
        %v640 = vunpack.c.l.b16 %v625
        %v641 = vunpack.c.l.b16 %v626
        %v642 = vunpack.c.l.b16 %v627
        %v643 = vunpack.c.l.b16 %v628
        %v644 = vpack.c.b16 %v641, %v640
        %v645 = vpack.c.b16 %v643, %v642
        %648 = vmatprep.subr.bf16.mxu0 0
        %649 = vmatpush1.bf16.msra.mxu0 0
        %650 = vmatprep.subr.bf16.mxu0 0
        %651 = vmatpush1.bf16.msra.mxu0 0
        %652 = vmatprep.subr.bf16.mxu0 0
        %653 = vmatpush1.bf16.msra.mxu0 0
        %654 = vmatprep.subr.bf16.mxu0 0
        %655 = vmatpush1.bf16.msra.mxu0 0
        %656 = vmatprep.subr.bf16.mxu0 0
        %657 = vmatpush1.bf16.msra.mxu0 0
        %658 = vmatprep.subr.bf16.mxu0 0
        %659 = vmatpush1.bf16.msra.mxu0 0
        %660 = vmatprep.subr.bf16.mxu0 0
        %661 = vmatpush1.bf16.msra.mxu0 %v645
        %662 = vmatprep.subr.bf16.mxu0 0
        %663 = vmatpush1.bf16.msra.mxu0 %v644
        %664 = vmatprep.subr.bf16.mxu0 0
        %665 = vmatpush2.bf16.msra.mxu0 0
        %666 = vmatprep.subr.bf16.mxu0 0
        %667 = vmatpush2.bf16.msra.mxu0 0
        %668 = vmatprep.subr.bf16.mxu0 0
        %669 = vmatpush2.bf16.msra.mxu0 0
        %670 = vmatprep.subr.bf16.mxu0 0
        %671 = vmatpush2.bf16.msra.mxu0 0
        %672 = vmatprep.subr.bf16.mxu0 0
        %673 = vmatpush2.bf16.msra.mxu0 0
        %674 = vmatprep.subr.bf16.mxu0 0
        %675 = vmatpush2.bf16.msra.mxu0 0
        %676 = vmatprep.subr.bf16.mxu0 0
        %677 = vmatpush2.bf16.msra.mxu0 0
        %678 = vmatprep.subr.bf16.mxu0 0
        %679 = vmatpush2.bf16.msra.mxu0 0
        %680 = vmatprep.mubr.bf16.mxu0 0
        %681 = vmatmul.mubr.bf16.gmra.mxu0 %v583
        %v682 = vpop.f32.mrf.mxu0
        %v683 = vadd.f32 %v634, %v682
        %v684 = vpop.f32.mrf.mxu0
        %v685 = vpop.f32.mrf.mxu0
        %v686 = vpop.f32.mrf.mxu0
        %687 = vdwg.mxu0
        %v688 = vpack.c.bf16 %v554, %v554
        %v689 = vpack.c.bf16 %v620, %v620
        %v690 = vpack.c.bf16 %v683, %v683
        %v691 = vld [vmem:[%s9] sm:$0x1]
        %v693 = vlaneseq
        %v694 = vshrl.u32 %v693, 7
        %v695 = vsub.s32 0, %v694
        %v696 = vrot.slane %v691, %v695
        %vm698 = vcmask 64512
        %v700 = vsel %vm698, %v688, 0
        %v703 = vsel %vm698, %v689, 0
        %705 = vmatprep.subr.bf16.mxu0 0
        %706 = vmatpush1.bf16.xpose.msra.mxu0 0
        %707 = vmatprep.subr.bf16.mxu0 0
        %708 = vmatpush1.bf16.xpose.msra.mxu0 0
        %709 = vmatprep.subr.bf16.mxu0 0
        %710 = vmatpush1.bf16.xpose.msra.mxu0 0
        %711 = vmatprep.subr.bf16.mxu0 0
        %712 = vmatpush1.bf16.xpose.msra.mxu0 0
        %713 = vmatprep.subr.bf16.mxu0 0
        %714 = vmatpush1.bf16.xpose.msra.mxu0 0
        %715 = vmatprep.subr.bf16.mxu0 0
        %716 = vmatpush1.bf16.xpose.msra.mxu0 0
        %717 = vmatprep.subr.bf16.mxu0 0
        %718 = vmatpush1.bf16.xpose.msra.mxu0 0
        %719 = vmatprep.subr.bf16.mxu0 0
        %720 = vmatpush1.bf16.xpose.msra.mxu0 %v703
        %721 = vmatprep.subr.bf16.mxu0 0
        %722 = vmatpush2.bf16.xpose.msra.mxu0 0
        %723 = vmatprep.subr.bf16.mxu0 0
        %724 = vmatpush2.bf16.xpose.msra.mxu0 0
        %725 = vmatprep.subr.bf16.mxu0 0
        %726 = vmatpush2.bf16.xpose.msra.mxu0 0
        %727 = vmatprep.subr.bf16.mxu0 0
        %728 = vmatpush2.bf16.xpose.msra.mxu0 0
        %729 = vmatprep.subr.bf16.mxu0 0
        %730 = vmatpush2.bf16.xpose.msra.mxu0 0
        %731 = vmatprep.subr.bf16.mxu0 0
        %732 = vmatpush2.bf16.xpose.msra.mxu0 0
        %733 = vmatprep.subr.bf16.mxu0 0
        %734 = vmatpush2.bf16.xpose.msra.mxu0 0
        %735 = vmatprep.subr.bf16.mxu0 0
        %736 = vmatpush2.bf16.xpose.msra.mxu0 0
        %737 = vmatprep.mubr.bf16.mxu0 0
        %738 = vmatmul.mubr.bf16.gmra.mxu0 %v700
        %v739 = vpop.f32.mrf.mxu0
        %v740 = vadd.f32 0.0, %v739
        %v741 = vpop.f32.mrf.mxu0
        %v742 = vpop.f32.mrf.mxu0
        %v743 = vpop.f32.mrf.mxu0
        %744 = vdwg.mxu0
        %v745 = vsel %vm698, %v740, -inf
        %746 = vmax.xlane.f32.xlu0 %v745
        %v747 = vpop.xlane.xlu0 %746
        %v748 = vsub.f32 %v740, %v747
        %v749 = vmul.f32 %v748, 1.442695
        %v750 = vpow.pop %v749
        %v751 = vsel %vm698, %v750, 0.0
        %752 = vadd.xlane.f32.xlu0 %v751
        %v753 = vpop.xlane.xlu0 %752
        %v754 = vpack.c.bf16 %v750, %v750
        %v756 = vsel %vm698, %v754, 0
        %vm758 = vcmask 1043456
        %v760 = vsel %vm758, %v690, 0
        %762 = vmatprep.subr.bf16.mxu0 0
        %763 = vmatpush1.bf16.msra.mxu0 0
        %764 = vmatprep.subr.bf16.mxu0 0
        %765 = vmatpush1.bf16.msra.mxu0 0
        %766 = vmatprep.subr.bf16.mxu0 0
        %767 = vmatpush1.bf16.msra.mxu0 0
        %768 = vmatprep.subr.bf16.mxu0 0
        %769 = vmatpush1.bf16.msra.mxu0 0
        %770 = vmatprep.subr.bf16.mxu0 0
        %771 = vmatpush1.bf16.msra.mxu0 0
        %772 = vmatprep.subr.bf16.mxu0 0
        %773 = vmatpush1.bf16.msra.mxu0 0
        %774 = vmatprep.subr.bf16.mxu0 0
        %775 = vmatpush1.bf16.msra.mxu0 0
        %776 = vmatprep.subr.bf16.mxu0 0
        %777 = vmatpush1.bf16.msra.mxu0 %v760
        %778 = vmatprep.subr.bf16.mxu0 0
        %779 = vmatpush2.bf16.msra.mxu0 0
        %780 = vmatprep.subr.bf16.mxu0 0
        %781 = vmatpush2.bf16.msra.mxu0 0
        %782 = vmatprep.subr.bf16.mxu0 0
        %783 = vmatpush2.bf16.msra.mxu0 0
        %784 = vmatprep.subr.bf16.mxu0 0
        %785 = vmatpush2.bf16.msra.mxu0 0
        %786 = vmatprep.subr.bf16.mxu0 0
        %787 = vmatpush2.bf16.msra.mxu0 0
        %788 = vmatprep.subr.bf16.mxu0 0
        %789 = vmatpush2.bf16.msra.mxu0 0
        %790 = vmatprep.subr.bf16.mxu0 0
        %791 = vmatpush2.bf16.msra.mxu0 0
        %792 = vmatprep.subr.bf16.mxu0 0
        %793 = vmatpush2.bf16.msra.mxu0 0
        %794 = vmatprep.mubr.bf16.mxu0 0
        %795 = vmatmul.mubr.bf16.gmra.mxu0 %v756
        %v796 = vpop.f32.mrf.mxu0
        %v797 = vadd.f32 0.0, %v796
        %v798 = vpop.f32.mrf.mxu0
        %v799 = vpop.f32.mrf.mxu0
        %v800 = vpop.f32.mrf.mxu0
        %801 = vdwg.mxu0
        %v802 = vrcp.pop %v753
        %v803 = vmul.f32 %v797, %v802
        %v804 = vpack.c.bf16 %v803, %v803
        %v805 = vld [vmem:[#allocation11] sm:$0xf]
        %v807 = vsel %vm698, %v804, 0
        %v810 = vsel %vm758, %v805, 0
        %812 = vmatprep.subr.bf16.mxu0 0
        %813 = vmatpush1.bf16.msra.mxu0 0
        %814 = vmatprep.subr.bf16.mxu0 0
        %815 = vmatpush1.bf16.msra.mxu0 0
        %816 = vmatprep.subr.bf16.mxu0 0
        %817 = vmatpush1.bf16.msra.mxu0 0
        %818 = vmatprep.subr.bf16.mxu0 0
        %819 = vmatpush1.bf16.msra.mxu0 0
        %820 = vmatprep.subr.bf16.mxu0 0
        %821 = vmatpush1.bf16.msra.mxu0 0
        %822 = vmatprep.subr.bf16.mxu0 0
        %823 = vmatpush1.bf16.msra.mxu0 0
        %824 = vmatprep.subr.bf16.mxu0 0
        %825 = vmatpush1.bf16.msra.mxu0 0
        %826 = vmatprep.subr.bf16.mxu0 0
        %827 = vmatpush1.bf16.msra.mxu0 %v810
        %828 = vmatprep.subr.bf16.mxu0 0
        %829 = vmatpush2.bf16.msra.mxu0 0
        %830 = vmatprep.subr.bf16.mxu0 0
        %831 = vmatpush2.bf16.msra.mxu0 0
        %832 = vmatprep.subr.bf16.mxu0 0
        %833 = vmatpush2.bf16.msra.mxu0 0
        %834 = vmatprep.subr.bf16.mxu0 0
        %835 = vmatpush2.bf16.msra.mxu0 0
        %836 = vmatprep.subr.bf16.mxu0 0
        %837 = vmatpush2.bf16.msra.mxu0 0
        %838 = vmatprep.subr.bf16.mxu0 0
        %839 = vmatpush2.bf16.msra.mxu0 0
        %840 = vmatprep.subr.bf16.mxu0 0
        %841 = vmatpush2.bf16.msra.mxu0 0
        %842 = vmatprep.subr.bf16.mxu0 0
        %843 = vmatpush2.bf16.msra.mxu0 0
        %844 = vmatprep.mubr.bf16.mxu0 0
        %845 = vmatmul.mubr.bf16.gmra.mxu0 %v807
        %v846 = vpop.f32.mrf.mxu0
        %v847 = vadd.f32 0.0, %v846
        %v848 = vpop.f32.mrf.mxu0
        %v849 = vpop.f32.mrf.mxu0
        %v850 = vpop.f32.mrf.mxu0
        %851 = vdwg.mxu0
        %v852 = vadd.f32 %v696, %v847
        %854 = vrot.lane.b32.xlu0 %v688, 120
        %v855 = vpop.permute.xlu0 %854
        %857 = vrot.lane.b32.xlu0 %v689, 120
        %v858 = vpop.permute.xlu0 %857
        %v860 = vsel %vm698, %v855, 0
        %v863 = vsel %vm698, %v858, 0
        %865 = vmatprep.subr.bf16.mxu0 0
        %866 = vmatpush1.bf16.xpose.msra.mxu0 0
        %867 = vmatprep.subr.bf16.mxu0 0
        %868 = vmatpush1.bf16.xpose.msra.mxu0 0
        %869 = vmatprep.subr.bf16.mxu0 0
        %870 = vmatpush1.bf16.xpose.msra.mxu0 0
        %871 = vmatprep.subr.bf16.mxu0 0
        %872 = vmatpush1.bf16.xpose.msra.mxu0 0
        %873 = vmatprep.subr.bf16.mxu0 0
        %874 = vmatpush1.bf16.xpose.msra.mxu0 0
        %875 = vmatprep.subr.bf16.mxu0 0
        %876 = vmatpush1.bf16.xpose.msra.mxu0 0
        %877 = vmatprep.subr.bf16.mxu0 0
        %878 = vmatpush1.bf16.xpose.msra.mxu0 0
        %879 = vmatprep.subr.bf16.mxu0 0
        %880 = vmatpush1.bf16.xpose.msra.mxu0 %v863
        %881 = vmatprep.subr.bf16.mxu0 0
        %882 = vmatpush2.bf16.xpose.msra.mxu0 0
        %883 = vmatprep.subr.bf16.mxu0 0
        %884 = vmatpush2.bf16.xpose.msra.mxu0 0
        %885 = vmatprep.subr.bf16.mxu0 0
        %886 = vmatpush2.bf16.xpose.msra.mxu0 0
        %887 = vmatprep.subr.bf16.mxu0 0
        %888 = vmatpush2.bf16.xpose.msra.mxu0 0
        %889 = vmatprep.subr.bf16.mxu0 0
        %890 = vmatpush2.bf16.xpose.msra.mxu0 0
        %891 = vmatprep.subr.bf16.mxu0 0
        %892 = vmatpush2.bf16.xpose.msra.mxu0 0
        %893 = vmatprep.subr.bf16.mxu0 0
        %894 = vmatpush2.bf16.xpose.msra.mxu0 0
        %895 = vmatprep.subr.bf16.mxu0 0
        %896 = vmatpush2.bf16.xpose.msra.mxu0 0
        %897 = vmatprep.mubr.bf16.mxu0 0
        %898 = vmatmul.mubr.bf16.gmra.mxu0 %v860
        %v899 = vpop.f32.mrf.mxu0
        %v900 = vadd.f32 0.0, %v899
        %v901 = vpop.f32.mrf.mxu0
        %v902 = vpop.f32.mrf.mxu0
        %v903 = vpop.f32.mrf.mxu0
        %904 = vdwg.mxu0
        %v905 = vsel %vm698, %v900, -inf
        %906 = vmax.xlane.f32.xlu0 %v905
        %v907 = vpop.xlane.xlu0 %906
        %v908 = vsub.f32 %v900, %v907
        %v909 = vmul.f32 %v908, 1.442695
        %v910 = vpow.pop %v909
        %v911 = vsel %vm698, %v910, 0.0
        %912 = vadd.xlane.f32.xlu0 %v911
        %v913 = vpop.xlane.xlu0 %912
        %v914 = vpack.c.bf16 %v910, %v910
        %916 = vrot.lane.b32.xlu0 %v690, 120
        %v917 = vpop.permute.xlu0 %916
        %v919 = vsel %vm698, %v914, 0
        %v922 = vsel %vm758, %v917, 0
        %924 = vmatprep.subr.bf16.mxu0 0
        %925 = vmatpush1.bf16.msra.mxu0 0
        %926 = vmatprep.subr.bf16.mxu0 0
        %927 = vmatpush1.bf16.msra.mxu0 0
        %928 = vmatprep.subr.bf16.mxu0 0
        %929 = vmatpush1.bf16.msra.mxu0 0
        %930 = vmatprep.subr.bf16.mxu0 0
        %931 = vmatpush1.bf16.msra.mxu0 0
        %932 = vmatprep.subr.bf16.mxu0 0
        %933 = vmatpush1.bf16.msra.mxu0 0
        %934 = vmatprep.subr.bf16.mxu0 0
        %935 = vmatpush1.bf16.msra.mxu0 0
        %936 = vmatprep.subr.bf16.mxu0 0
        %937 = vmatpush1.bf16.msra.mxu0 0
        %938 = vmatprep.subr.bf16.mxu0 0
        %939 = vmatpush1.bf16.msra.mxu0 %v922
        %940 = vmatprep.subr.bf16.mxu0 0
        %941 = vmatpush2.bf16.msra.mxu0 0
        %942 = vmatprep.subr.bf16.mxu0 0
        %943 = vmatpush2.bf16.msra.mxu0 0
        %944 = vmatprep.subr.bf16.mxu0 0
        %945 = vmatpush2.bf16.msra.mxu0 0
        %946 = vmatprep.subr.bf16.mxu0 0
        %947 = vmatpush2.bf16.msra.mxu0 0
        %948 = vmatprep.subr.bf16.mxu0 0
        %949 = vmatpush2.bf16.msra.mxu0 0
        %950 = vmatprep.subr.bf16.mxu0 0
        %951 = vmatpush2.bf16.msra.mxu0 0
        %952 = vmatprep.subr.bf16.mxu0 0
        %953 = vmatpush2.bf16.msra.mxu0 0
        %954 = vmatprep.subr.bf16.mxu0 0
        %955 = vmatpush2.bf16.msra.mxu0 0
        %956 = vmatprep.mubr.bf16.mxu0 0
        %957 = vmatmul.mubr.bf16.gmra.mxu0 %v919
        %v958 = vpop.f32.mrf.mxu0
        %v959 = vadd.f32 0.0, %v958
        %v960 = vpop.f32.mrf.mxu0
        %v961 = vpop.f32.mrf.mxu0
        %v962 = vpop.f32.mrf.mxu0
        %963 = vdwg.mxu0
        %v964 = vrcp.pop %v913
        %v965 = vmul.f32 %v959, %v964
        %v966 = vpack.c.bf16 %v965, %v965
        %v967 = vld [vmem:[#allocation11 + $0x4] sm:$0xf]
        %v969 = vsel %vm698, %v966, 0
        %v972 = vsel %vm758, %v967, 0
        %974 = vmatprep.subr.bf16.mxu0 0
        %975 = vmatpush1.bf16.msra.mxu0 0
        %976 = vmatprep.subr.bf16.mxu0 0
        %977 = vmatpush1.bf16.msra.mxu0 0
        %978 = vmatprep.subr.bf16.mxu0 0
        %979 = vmatpush1.bf16.msra.mxu0 0
        %980 = vmatprep.subr.bf16.mxu0 0
        %981 = vmatpush1.bf16.msra.mxu0 0
        %982 = vmatprep.subr.bf16.mxu0 0
        %983 = vmatpush1.bf16.msra.mxu0 0
        %984 = vmatprep.subr.bf16.mxu0 0
        %985 = vmatpush1.bf16.msra.mxu0 0
        %986 = vmatprep.subr.bf16.mxu0 0
        %987 = vmatpush1.bf16.msra.mxu0 0
        %988 = vmatprep.subr.bf16.mxu0 0
        %989 = vmatpush1.bf16.msra.mxu0 %v972
        %990 = vmatprep.subr.bf16.mxu0 0
        %991 = vmatpush2.bf16.msra.mxu0 0
        %992 = vmatprep.subr.bf16.mxu0 0
        %993 = vmatpush2.bf16.msra.mxu0 0
        %994 = vmatprep.subr.bf16.mxu0 0
        %995 = vmatpush2.bf16.msra.mxu0 0
        %996 = vmatprep.subr.bf16.mxu0 0
        %997 = vmatpush2.bf16.msra.mxu0 0
        %998 = vmatprep.subr.bf16.mxu0 0
        %999 = vmatpush2.bf16.msra.mxu0 0
        %1000 = vmatprep.subr.bf16.mxu0 0
        %1001 = vmatpush2.bf16.msra.mxu0 0
        %1002 = vmatprep.subr.bf16.mxu0 0
        %1003 = vmatpush2.bf16.msra.mxu0 0
        %1004 = vmatprep.subr.bf16.mxu0 0
        %1005 = vmatpush2.bf16.msra.mxu0 0
        %1006 = vmatprep.mubr.bf16.mxu0 0
        %1007 = vmatmul.mubr.bf16.gmra.mxu0 %v969
        %v1008 = vpop.f32.mrf.mxu0
        %v1009 = vadd.f32 0.0, %v1008
        %v1010 = vpop.f32.mrf.mxu0
        %v1011 = vpop.f32.mrf.mxu0
        %v1012 = vpop.f32.mrf.mxu0
        %1013 = vdwg.mxu0
        %v1014 = vadd.f32 %v852, %v1009
        %1015 = vrot.lane.b32.xlu0 %v688, 112
        %v1016 = vpop.permute.xlu0 %1015
        %1017 = vrot.lane.b32.xlu0 %v689, 112
        %v1018 = vpop.permute.xlu0 %1017
        %v1020 = vsel %vm698, %v1016, 0
        %v1023 = vsel %vm698, %v1018, 0
        %1025 = vmatprep.subr.bf16.mxu0 0
        %1026 = vmatpush1.bf16.xpose.msra.mxu0 0
        %1027 = vmatprep.subr.bf16.mxu0 0
        %1028 = vmatpush1.bf16.xpose.msra.mxu0 0
        %1029 = vmatprep.subr.bf16.mxu0 0
        %1030 = vmatpush1.bf16.xpose.msra.mxu0 0
        %1031 = vmatprep.subr.bf16.mxu0 0
        %1032 = vmatpush1.bf16.xpose.msra.mxu0 0
        %1033 = vmatprep.subr.bf16.mxu0 0
        %1034 = vmatpush1.bf16.xpose.msra.mxu0 0
        %1035 = vmatprep.subr.bf16.mxu0 0
        %1036 = vmatpush1.bf16.xpose.msra.mxu0 0
        %1037 = vmatprep.subr.bf16.mxu0 0
        %1038 = vmatpush1.bf16.xpose.msra.mxu0 0
        %1039 = vmatprep.subr.bf16.mxu0 0
        %1040 = vmatpush1.bf16.xpose.msra.mxu0 %v1023
        %1041 = vmatprep.subr.bf16.mxu0 0
        %1042 = vmatpush2.bf16.xpose.msra.mxu0 0
        %1043 = vmatprep.subr.bf16.mxu0 0
        %1044 = vmatpush2.bf16.xpose.msra.mxu0 0
        %1045 = vmatprep.subr.bf16.mxu0 0
        %1046 = vmatpush2.bf16.xpose.msra.mxu0 0
        %1047 = vmatprep.subr.bf16.mxu0 0
        %1048 = vmatpush2.bf16.xpose.msra.mxu0 0
        %1049 = vmatprep.subr.bf16.mxu0 0
        %1050 = vmatpush2.bf16.xpose.msra.mxu0 0
        %1051 = vmatprep.subr.bf16.mxu0 0
        %1052 = vmatpush2.bf16.xpose.msra.mxu0 0
        %1053 = vmatprep.subr.bf16.mxu0 0
        %1054 = vmatpush2.bf16.xpose.msra.mxu0 0
        %1055 = vmatprep.subr.bf16.mxu0 0
        %1056 = vmatpush2.bf16.xpose.msra.mxu0 0
        %1057 = vmatprep.mubr.bf16.mxu0 0
        %1058 = vmatmul.mubr.bf16.gmra.mxu0 %v1020
        %v1059 = vpop.f32.mrf.mxu0
        %v1060 = vadd.f32 0.0, %v1059
        %v1061 = vpop.f32.mrf.mxu0
        %v1062 = vpop.f32.mrf.mxu0
        %v1063 = vpop.f32.mrf.mxu0
        %1064 = vdwg.mxu0
        %v1065 = vsel %vm698, %v1060, -inf
        %1066 = vmax.xlane.f32.xlu0 %v1065
        %v1067 = vpop.xlane.xlu0 %1066
        %v1068 = vsub.f32 %v1060, %v1067
        %v1069 = vmul.f32 %v1068, 1.442695
        %v1070 = vpow.pop %v1069
        %v1071 = vsel %vm698, %v1070, 0.0
        %1072 = vadd.xlane.f32.xlu0 %v1071
        %v1073 = vpop.xlane.xlu0 %1072
        %v1074 = vpack.c.bf16 %v1070, %v1070
        %1075 = vrot.lane.b32.xlu0 %v690, 112
        %v1076 = vpop.permute.xlu0 %1075
        %v1078 = vsel %vm698, %v1074, 0
        %v1081 = vsel %vm758, %v1076, 0
        %1083 = vmatprep.subr.bf16.mxu0 0
        %1084 = vmatpush1.bf16.msra.mxu0 0
        %1085 = vmatprep.subr.bf16.mxu0 0
        %1086 = vmatpush1.bf16.msra.mxu0 0
        %1087 = vmatprep.subr.bf16.mxu0 0
        %1088 = vmatpush1.bf16.msra.mxu0 0
        %1089 = vmatprep.subr.bf16.mxu0 0
        %1090 = vmatpush1.bf16.msra.mxu0 0
        %1091 = vmatprep.subr.bf16.mxu0 0
        %1092 = vmatpush1.bf16.msra.mxu0 0
        %1093 = vmatprep.subr.bf16.mxu0 0
        %1094 = vmatpush1.bf16.msra.mxu0 0
        %1095 = vmatprep.subr.bf16.mxu0 0
        %1096 = vmatpush1.bf16.msra.mxu0 0
        %1097 = vmatprep.subr.bf16.mxu0 0
        %1098 = vmatpush1.bf16.msra.mxu0 %v1081
        %1099 = vmatprep.subr.bf16.mxu0 0
        %1100 = vmatpush2.bf16.msra.mxu0 0
        %1101 = vmatprep.subr.bf16.mxu0 0
        %1102 = vmatpush2.bf16.msra.mxu0 0
        %1103 = vmatprep.subr.bf16.mxu0 0
        %1104 = vmatpush2.bf16.msra.mxu0 0
        %1105 = vmatprep.subr.bf16.mxu0 0
        %1106 = vmatpush2.bf16.msra.mxu0 0
        %1107 = vmatprep.subr.bf16.mxu0 0
        %1108 = vmatpush2.bf16.msra.mxu0 0
        %1109 = vmatprep.subr.bf16.mxu0 0
        %1110 = vmatpush2.bf16.msra.mxu0 0
        %1111 = vmatprep.subr.bf16.mxu0 0
        %1112 = vmatpush2.bf16.msra.mxu0 0
        %1113 = vmatprep.subr.bf16.mxu0 0
        %1114 = vmatpush2.bf16.msra.mxu0 0
        %1115 = vmatprep.mubr.bf16.mxu0 0
        %1116 = vmatmul.mubr.bf16.gmra.mxu0 %v1078
        %v1117 = vpop.f32.mrf.mxu0
        %v1118 = vadd.f32 0.0, %v1117
        %v1119 = vpop.f32.mrf.mxu0
        %v1120 = vpop.f32.mrf.mxu0
        %v1121 = vpop.f32.mrf.mxu0
        %1122 = vdwg.mxu0
        %v1123 = vrcp.pop %v1073
        %v1124 = vmul.f32 %v1118, %v1123
        %v1125 = vpack.c.bf16 %v1124, %v1124
        %v1126 = vld [vmem:[#allocation11 + $0x8] sm:$0xf]
        %v1128 = vsel %vm698, %v1125, 0
        %v1131 = vsel %vm758, %v1126, 0
        %1133 = vmatprep.subr.bf16.mxu0 0
        %1134 = vmatpush1.bf16.msra.mxu0 0
        %1135 = vmatprep.subr.bf16.mxu0 0
        %1136 = vmatpush1.bf16.msra.mxu0 0
        %1137 = vmatprep.subr.bf16.mxu0 0
        %1138 = vmatpush1.bf16.msra.mxu0 0
        %1139 = vmatprep.subr.bf16.mxu0 0
        %1140 = vmatpush1.bf16.msra.mxu0 0
        %1141 = vmatprep.subr.bf16.mxu0 0
        %1142 = vmatpush1.bf16.msra.mxu0 0
        %1143 = vmatprep.subr.bf16.mxu0 0
        %1144 = vmatpush1.bf16.msra.mxu0 0
        %1145 = vmatprep.subr.bf16.mxu0 0
        %1146 = vmatpush1.bf16.msra.mxu0 0
        %1147 = vmatprep.subr.bf16.mxu0 0
        %1148 = vmatpush1.bf16.msra.mxu0 %v1131
        %1149 = vmatprep.subr.bf16.mxu0 0
        %1150 = vmatpush2.bf16.msra.mxu0 0
        %1151 = vmatprep.subr.bf16.mxu0 0
        %1152 = vmatpush2.bf16.msra.mxu0 0
        %1153 = vmatprep.subr.bf16.mxu0 0
        %1154 = vmatpush2.bf16.msra.mxu0 0
        %1155 = vmatprep.subr.bf16.mxu0 0
        %1156 = vmatpush2.bf16.msra.mxu0 0
        %1157 = vmatprep.subr.bf16.mxu0 0
        %1158 = vmatpush2.bf16.msra.mxu0 0
        %1159 = vmatprep.subr.bf16.mxu0 0
        %1160 = vmatpush2.bf16.msra.mxu0 0
        %1161 = vmatprep.subr.bf16.mxu0 0
        %1162 = vmatpush2.bf16.msra.mxu0 0
        %1163 = vmatprep.subr.bf16.mxu0 0
        %1164 = vmatpush2.bf16.msra.mxu0 0
        %1165 = vmatprep.mubr.bf16.mxu0 0
        %1166 = vmatmul.mubr.bf16.gmra.mxu0 %v1128
        %v1167 = vpop.f32.mrf.mxu0
        %v1168 = vadd.f32 0.0, %v1167
        %v1169 = vpop.f32.mrf.mxu0
        %v1170 = vpop.f32.mrf.mxu0
        %v1171 = vpop.f32.mrf.mxu0
        %1172 = vdwg.mxu0
        %v1173 = vadd.f32 %v1014, %v1168
        %1174 = vrot.lane.b32.xlu0 %v688, 104
        %v1175 = vpop.permute.xlu0 %1174
        %1176 = vrot.lane.b32.xlu0 %v689, 104
        %v1177 = vpop.permute.xlu0 %1176
        %v1179 = vsel %vm698, %v1175, 0
        %v1182 = vsel %vm698, %v1177, 0
        %1184 = vmatprep.subr.bf16.mxu0 0
        %1185 = vmatpush1.bf16.xpose.msra.mxu0 0
        %1186 = vmatprep.subr.bf16.mxu0 0
        %1187 = vmatpush1.bf16.xpose.msra.mxu0 0
        %1188 = vmatprep.subr.bf16.mxu0 0
        %1189 = vmatpush1.bf16.xpose.msra.mxu0 0
        %1190 = vmatprep.subr.bf16.mxu0 0
        %1191 = vmatpush1.bf16.xpose.msra.mxu0 0
        %1192 = vmatprep.subr.bf16.mxu0 0
        %1193 = vmatpush1.bf16.xpose.msra.mxu0 0
        %1194 = vmatprep.subr.bf16.mxu0 0
        %1195 = vmatpush1.bf16.xpose.msra.mxu0 0
        %1196 = vmatprep.subr.bf16.mxu0 0
        %1197 = vmatpush1.bf16.xpose.msra.mxu0 0
        %1198 = vmatprep.subr.bf16.mxu0 0
        %1199 = vmatpush1.bf16.xpose.msra.mxu0 %v1182
        %1200 = vmatprep.subr.bf16.mxu0 0
        %1201 = vmatpush2.bf16.xpose.msra.mxu0 0
        %1202 = vmatprep.subr.bf16.mxu0 0
        %1203 = vmatpush2.bf16.xpose.msra.mxu0 0
        %1204 = vmatprep.subr.bf16.mxu0 0
        %1205 = vmatpush2.bf16.xpose.msra.mxu0 0
        %1206 = vmatprep.subr.bf16.mxu0 0
        %1207 = vmatpush2.bf16.xpose.msra.mxu0 0
        %1208 = vmatprep.subr.bf16.mxu0 0
        %1209 = vmatpush2.bf16.xpose.msra.mxu0 0
        %1210 = vmatprep.subr.bf16.mxu0 0
        %1211 = vmatpush2.bf16.xpose.msra.mxu0 0
        %1212 = vmatprep.subr.bf16.mxu0 0
        %1213 = vmatpush2.bf16.xpose.msra.mxu0 0
        %1214 = vmatprep.subr.bf16.mxu0 0
        %1215 = vmatpush2.bf16.xpose.msra.mxu0 0
        %1216 = vmatprep.mubr.bf16.mxu0 0
        %1217 = vmatmul.mubr.bf16.gmra.mxu0 %v1179
        %v1218 = vpop.f32.mrf.mxu0
        %v1219 = vadd.f32 0.0, %v1218
        %v1220 = vpop.f32.mrf.mxu0
        %v1221 = vpop.f32.mrf.mxu0
        %v1222 = vpop.f32.mrf.mxu0
        %1223 = vdwg.mxu0
        %v1224 = vsel %vm698, %v1219, -inf
        %1225 = vmax.xlane.f32.xlu0 %v1224
        %v1226 = vpop.xlane.xlu0 %1225
        %v1227 = vsub.f32 %v1219, %v1226
        %v1228 = vmul.f32 %v1227, 1.442695
        %v1229 = vpow.pop %v1228
        %v1230 = vsel %vm698, %v1229, 0.0
        %1231 = vadd.xlane.f32.xlu0 %v1230
        %v1232 = vpop.xlane.xlu0 %1231
        %v1233 = vpack.c.bf16 %v1229, %v1229
        %1234 = vrot.lane.b32.xlu0 %v690, 104
        %v1235 = vpop.permute.xlu0 %1234
        %v1237 = vsel %vm698, %v1233, 0
        %v1240 = vsel %vm758, %v1235, 0
        %1242 = vmatprep.subr.bf16.mxu0 0
        %1243 = vmatpush1.bf16.msra.mxu0 0
        %1244 = vmatprep.subr.bf16.mxu0 0
        %1245 = vmatpush1.bf16.msra.mxu0 0
        %1246 = vmatprep.subr.bf16.mxu0 0
        %1247 = vmatpush1.bf16.msra.mxu0 0
        %1248 = vmatprep.subr.bf16.mxu0 0
        %1249 = vmatpush1.bf16.msra.mxu0 0
        %1250 = vmatprep.subr.bf16.mxu0 0
        %1251 = vmatpush1.bf16.msra.mxu0 0
        %1252 = vmatprep.subr.bf16.mxu0 0
        %1253 = vmatpush1.bf16.msra.mxu0 0
        %1254 = vmatprep.subr.bf16.mxu0 0
        %1255 = vmatpush1.bf16.msra.mxu0 0
        %1256 = vmatprep.subr.bf16.mxu0 0
        %1257 = vmatpush1.bf16.msra.mxu0 %v1240
        %1258 = vmatprep.subr.bf16.mxu0 0
        %1259 = vmatpush2.bf16.msra.mxu0 0
        %1260 = vmatprep.subr.bf16.mxu0 0
        %1261 = vmatpush2.bf16.msra.mxu0 0
        %1262 = vmatprep.subr.bf16.mxu0 0
        %1263 = vmatpush2.bf16.msra.mxu0 0
        %1264 = vmatprep.subr.bf16.mxu0 0
        %1265 = vmatpush2.bf16.msra.mxu0 0
        %1266 = vmatprep.subr.bf16.mxu0 0
        %1267 = vmatpush2.bf16.msra.mxu0 0
        %1268 = vmatprep.subr.bf16.mxu0 0
        %1269 = vmatpush2.bf16.msra.mxu0 0
        %1270 = vmatprep.subr.bf16.mxu0 0
        %1271 = vmatpush2.bf16.msra.mxu0 0
        %1272 = vmatprep.subr.bf16.mxu0 0
        %1273 = vmatpush2.bf16.msra.mxu0 0
        %1274 = vmatprep.mubr.bf16.mxu0 0
        %1275 = vmatmul.mubr.bf16.gmra.mxu0 %v1237
        %v1276 = vpop.f32.mrf.mxu0
        %v1277 = vadd.f32 0.0, %v1276
        %v1278 = vpop.f32.mrf.mxu0
        %v1279 = vpop.f32.mrf.mxu0
        %v1280 = vpop.f32.mrf.mxu0
        %1281 = vdwg.mxu0
        %v1282 = vrcp.pop %v1232
        %v1283 = vmul.f32 %v1277, %v1282
        %v1284 = vpack.c.bf16 %v1283, %v1283
        %v1285 = vld [vmem:[#allocation11 + $0xc] sm:$0xf]
        %v1287 = vsel %vm698, %v1284, 0
        %v1290 = vsel %vm758, %v1285, 0
        %1292 = vmatprep.subr.bf16.mxu0 0
        %1293 = vmatpush1.bf16.msra.mxu0 0
        %1294 = vmatprep.subr.bf16.mxu0 0
        %1295 = vmatpush1.bf16.msra.mxu0 0
        %1296 = vmatprep.subr.bf16.mxu0 0
        %1297 = vmatpush1.bf16.msra.mxu0 0
        %1298 = vmatprep.subr.bf16.mxu0 0
        %1299 = vmatpush1.bf16.msra.mxu0 0
        %1300 = vmatprep.subr.bf16.mxu0 0
        %1301 = vmatpush1.bf16.msra.mxu0 0
        %1302 = vmatprep.subr.bf16.mxu0 0
        %1303 = vmatpush1.bf16.msra.mxu0 0
        %1304 = vmatprep.subr.bf16.mxu0 0
        %1305 = vmatpush1.bf16.msra.mxu0 0
        %1306 = vmatprep.subr.bf16.mxu0 0
        %1307 = vmatpush1.bf16.msra.mxu0 %v1290
        %1308 = vmatprep.subr.bf16.mxu0 0
        %1309 = vmatpush2.bf16.msra.mxu0 0
        %1310 = vmatprep.subr.bf16.mxu0 0
        %1311 = vmatpush2.bf16.msra.mxu0 0
        %1312 = vmatprep.subr.bf16.mxu0 0
        %1313 = vmatpush2.bf16.msra.mxu0 0
        %1314 = vmatprep.subr.bf16.mxu0 0
        %1315 = vmatpush2.bf16.msra.mxu0 0
        %1316 = vmatprep.subr.bf16.mxu0 0
        %1317 = vmatpush2.bf16.msra.mxu0 0
        %1318 = vmatprep.subr.bf16.mxu0 0
        %1319 = vmatpush2.bf16.msra.mxu0 0
        %1320 = vmatprep.subr.bf16.mxu0 0
        %1321 = vmatpush2.bf16.msra.mxu0 0
        %1322 = vmatprep.subr.bf16.mxu0 0
        %1323 = vmatpush2.bf16.msra.mxu0 0
        %1324 = vmatprep.mubr.bf16.mxu0 0
        %1325 = vmatmul.mubr.bf16.gmra.mxu0 %v1287
        %v1326 = vpop.f32.mrf.mxu0
        %v1327 = vadd.f32 0.0, %v1326
        %v1328 = vpop.f32.mrf.mxu0
        %v1329 = vpop.f32.mrf.mxu0
        %v1330 = vpop.f32.mrf.mxu0
        %1331 = vdwg.mxu0
        %v1332 = vadd.f32 %v1173, %v1327
        %1333 = vst.msk [vmem:[%s486] sm:$0xff] %vm515, %v1332
        %s1334 = sand.u32 %s276, 1
        %s1335 = scalar_lea.sflag [#allocation4], %s1334
        %s1336 = sand.u32 %s276, 1
        %s1337 = smul.addr %s1336, 8
        %s1338 = scalar_lea.vmem [#allocation13], %s1337
        // Predicated region
        $region85: #{tpu_custom_call.1} parent=59 // pred_check
          %p1339 = pneg %p286
        $region86: #{tpu_custom_call.1} parent=59 // pred_check_branch
          %1341 = sbr.rel (%p1339) target = $region88
        $region87: #{tpu_custom_call.1} parent=59 // pred_region
          %s1343 = ssub.s32 128, 128
          %1344 = vsyncadd %s1335, %s1343
          %s1345 = sadd.s32 %s37, %s36
          %s1346 = smul.addr %s1345, 128
          %s1347 = scalar_lea.hbm %s10, %s1346
          %s1349 = sshll.u32 %s1338, 4
          %s1350 = int_to_ptr.vmem [resolvable:$true] %s1349
          %1352 = dma.vmem_to_hbm [thread:$0]  %s1350, 128, %s1347, %s1335
        $region88: #{tpu_custom_call.1} parent=59 // pred_fallthru
          _
      $region60: #{tpu_custom_call.1} parent=5 // pred_fallthru
        _
      %p1353 = scmp.le.s32.totalorder 2, %s27
      // Predicated region
      $region89: #{tpu_custom_call.1} parent=5 // pred_check
        %p1354 = pneg %p1353
      $region90: #{tpu_custom_call.1} parent=5 // pred_check_branch
        %1356 = sbr.rel (%p1354) target = $region92
      $region91: #{tpu_custom_call.1} parent=5 // pred_region
        %s1357 = ssub.s32 %s27, 2
        // Predicated region
        $region93: #{tpu_custom_call.1} parent=91 // pred_check
          %p1358 = pneg %p292
        $region94: #{tpu_custom_call.1} parent=91 // pred_check_branch
          %1360 = sbr.rel (%p1358) target = $region96
        $region95: #{tpu_custom_call.1} parent=91 // pred_region
          %s1361 = sand.u32 %s277, 1
          %s1362 = scalar_lea.sflag [#allocation4], %s1361
          %s1363 = sand.u32 %s277, 1
          %s1364 = smul.addr %s1363, 8
          %s1365 = scalar_lea.vmem [#allocation13], %s1364
          %1366 = dma.done %s1362, 128
        $region96: #{tpu_custom_call.1} parent=91 // pred_fallthru
          _
      $region92: #{tpu_custom_call.1} parent=5 // pred_fallthru
        _
    $region6: #{tpu_custom_call.1} parent=1 // loop_footer
      %s31 = sadd.s32 1, %s27
    $region7: #{tpu_custom_call.1} parent=1 // loop_footer_branch
      %26 = sbr.rel target = $region3
    $region8: #{tpu_custom_call.1} parent=1 // loop_exit
      _
    %1367 = vsyncpa [#allocation3], 1
    %s1368 = scalar_lea.sflag [#allocation3], 1
    %1369 = vsyncpa %s1368, 1
    %1370 = vsyncpa [#allocation6], 1
    %s1371 = scalar_lea.sflag [#allocation6], 1
    %1372 = vsyncpa %s1371, 1
    %1373 = vsyncpa [#allocation9], 1
    %1374 = vsyncpa [#allocation12], 1
    %1375 = vsyncpa [#allocation4], 1
    %s1376 = scalar_lea.sflag [#allocation4], 1
    %1377 = vsyncpa %s1376, 1

</llo_original>
